<compile_context>
chip_gen: v7x
topology: tpu7x:2x2x1
jax: 0.10.0
libtpu: 0.0.40
codegen_flags: <defaults>
</compile_context>

<pallas_src>
import math
import functools
import numpy as np
import jax
import jax.numpy as jnp
from jax.experimental import pallas as pl
from jax.experimental.pallas import tpu as pltpu

EPS = 1e-5


def _round_up(v, m):
    return ((v + m - 1) // m) * m


# ----------------------------- resampling-matrix construction (host, cached) -----------------------------

def make_resample_matrix(in_size, out_size):
    """1-D resampling matrix equivalent to F.grid_sample(mode='bilinear',
    padding_mode='zeros', align_corners=False) with a linspace(-1, 1) grid."""
    g = np.linspace(-1.0, 1.0, out_size)
    coord = ((g + 1.0) * in_size - 1.0) / 2.0          # unnormalize, align_corners=False
    i0 = np.floor(coord).astype(np.int64)
    i1 = i0 + 1
    w1 = coord - i0
    w0 = 1.0 - w1
    R = np.zeros((out_size, in_size), dtype=np.float32)
    for j in range(out_size):
        if 0 <= i0[j] < in_size:
            R[j, i0[j]] += w0[j]
        if 0 <= i1[j] < in_size:
            R[j, i1[j]] += w1[j]                       # OOB taps contribute zero (zeros padding)
    return R


@functools.lru_cache(maxsize=None)
def _make_constants(N, H, W, H_t, W_t, Hp, Wp, S):
    """Per-image resample matrix (pad ring fused in, bf16) + interior-lane mask (f32)."""
    Rh = make_resample_matrix(H, H_t)                  # (H_t, H)
    Rw = make_resample_matrix(W, W_t)                  # (W_t, W)
    # rimg[(h*W+w), ((1+i)*Wp + (1+j))] = Rh[i,h] * Rw[j,w]  (ring / pad columns stay exactly zero)
    K = np.einsum("ih,jw->hwij", Rh, Rw).astype(np.float32)      # (H, W, H_t, W_t)
    rimg4 = np.zeros((H, W, Hp, Wp), np.float32)
    rimg4[:, :, 1:1 + H_t, 1:1 + W_t] = K
    rimg = rimg4.reshape(H * W, Hp * Wp)

    mblk = np.zeros((Hp, Wp), np.float32)
    mblk[1:1 + H_t, 1:1 + W_t] = 1.0                   # 1 at real pixels, 0 on the zero-pad ring
    m = np.zeros((N, S), np.float32)                   # dead tail lanes of each image block stay 0
    m[:, :Hp * Wp] = mblk.reshape(-1)[None, :]
    mask = m.reshape(1, N * S)
    return jnp.asarray(rimg, dtype=jnp.bfloat16), jnp.asarray(mask)


# ----------------------------- fused Pallas kernel -----------------------------

def _make_cv_block_kernel(N, C, planes, KP, Wp, HpWp, S, padl, L, ext, count, has_new):
    inv_cnt = 1.0 / float(count)
    # Tap k = kh*3 + kw  ->  flattened lane shift d.  Interior output pixels only ever read inside
    # their own padded image block; ring / dead lanes read garbage and are masked / discarded.
    offsets = [(kh - 1) * Wp + (kw - 1) for kh in range(3) for kw in range(3)]

    def kernel(x_ref, rimg_ref, mask_ref, g1_ref, b1_ref, g2_ref, b2_ref,
               w1c_ref, w2c_ref, *rest):
        if has_new:
            eye_ref, wnew_ref, o_ref, xr_ref, h1_ref, h2_ref, col_ref = rest
        else:
            o_ref, xr_ref, h1_ref, h2_ref, col_ref = rest

        mask = mask_ref[...]                                       # (1, L) f32

        # ---- grid_sample (bilinear, zeros, align_corners=False): one bf16 matmul against the
        #      per-image, pad-fused resample matrix; f32 accumulation on the MXU. ----
        y = jnp.dot(x_ref[...], rimg_ref[...],
                    preferred_element_type=jnp.float32)            # (N*C, Hp*Wp) f32

        # Scatter per-image blocks into the (channels x batch*padded-spatial) lane layout.
        # All lane offsets are multiples of 128 (S is 128-aligned); the zero-fill also zeroes the
        # dead tail lanes of each block so the BN sums stay unbiased and finite.
        xr_ref[...] = jnp.zeros((C, L), jnp.float32)
        for n in range(N):
            xr_ref[:, n * S: n * S + HpWp] = y[n * C:(n + 1) * C, :]
        xr = xr_ref[...]                                           # (C, L) f32

        # ---- bn1 (training-mode batch stats; ring/dead lanes are exact zeros) ----
        mu1 = jnp.sum(xr, axis=1, keepdims=True) * inv_cnt
        c1 = (xr - mu1) * mask
        var1 = jnp.sum(c1 * c1, axis=1, keepdims=True) * inv_cnt
        x1 = (xr - mu1) * jax.lax.rsqrt(var1 + EPS) * g1_ref[...] + b1_ref[...]

        # ---- residual path, computed early so xr / x1 don't stay live through the convs.
        #      rows [:C] <- xr (identity),  rows [C:] <- conv_new(bn1(x)); two tiny K=C f32 matmuls
        #      keep the un-normalized residual at f32 precision and give a single output store. ----
        if has_new:
            resid = (jnp.dot(eye_ref[...], xr, preferred_element_type=jnp.float32) +
                     jnp.dot(wnew_ref[...], x1, preferred_element_type=jnp.float32))
        else:
            resid = xr

        # ---- stage relu(bn1) into the padded layout: zero edge bands + channel-pad rows only ----
        h1_ref[:, 0:padl] = jnp.zeros((KP, padl), jnp.float32)
        h1_ref[:, padl + L:ext] = jnp.zeros((KP, ext - padl - L), jnp.float32)
        if KP > C:
            h1_ref[C:KP, :] = jnp.zeros((KP - C, ext), jnp.float32)
        h1_ref[0:C, padl:padl + L] = jnp.maximum(x1, 0.0) * mask   # re-zero the padding ring

        # ---- conv1: sublane im2col (9 aligned KP-row copies) + ONE bf16 matmul (K = 9*KP) ----
        for k, d in enumerate(offsets):
            col_ref[k * KP:(k + 1) * KP, :] = h1_ref[:, padl + d: padl + d + L]
        acc1 = jnp.dot(w1c_ref[...], col_ref[...].astype(jnp.bfloat16),
                       preferred_element_type=jnp.float32)         # (planes, L) f32

        # ---- bn2 + relu (mask the garbage ring lanes out of the stats and the conv2 input) ----
        a1 = acc1 * mask
        mu2 = jnp.sum(a1, axis=1, keepdims=True) * inv_cnt
        c2 = (acc1 - mu2) * mask
        var2 = jnp.sum(c2 * c2, axis=1, keepdims=True) * inv_cnt
        h2 = jnp.maximum((acc1 - mu2) * jax.lax.rsqrt(var2 + EPS) * g2_ref[...] + b2_ref[...],
                         0.0) * mask                               # (planes, L), zero on the ring

        h2_ref[:, 0:padl] = jnp.zeros((KP, padl), jnp.float32)
        h2_ref[:, padl + L:ext] = jnp.zeros((KP, ext - padl - L), jnp.float32)
        if KP > planes:
            h2_ref[planes:KP, :] = jnp.zeros((KP - planes, ext), jnp.float32)
        h2_ref[0:planes, padl:padl + L] = h2

        # ---- conv2: same im2col + ONE bf16 matmul ----
        for k, d in enumerate(offsets):
            col_ref[k * KP:(k + 1) * KP, :] = h2_ref[:, padl + d: padl + d + L]
        acc2 = jnp.dot(w2c_ref[...], col_ref[...].astype(jnp.bfloat16),
                       preferred_element_type=jnp.float32)         # (planes, L) f32

        # ---- single unmasked full-tile output store (ring/dead lanes are garbage by contract) ----
        o_ref[...] = acc2 + resid

    return kernel


# ----------------------------- params / wrapper -----------------------------

def init_params(key, in_planes, planes):
    k1, k2, k3 = jax.random.split(key, 3)
    w1 = jax.random.normal(k1, (planes, in_planes, 3, 3), jnp.float32) * 0.1   # OIHW
    w2 = jax.random.normal(k2, (planes, planes, 3, 3), jnp.float32) * 0.1      # OIHW
    KP = max(_round_up(in_planes, 8), _round_up(planes, 8))       # per-tap sublane stride (aligned)

    def taps_to_col(w_oihw, cin):
        # (O, I, 3, 3) -> (O, 9*KP) slab matching the im2col scratch layout; pad channels are zero.
        w_np = np.asarray(w_oihw)
        col = np.zeros((planes, 9 * KP), np.float32)
        for kh in range(3):
            for kw in range(3):
                k = kh * 3 + kw
                col[:, k * KP:k * KP + cin] = w_np[:, :, kh, kw]
        return jnp.asarray(col, dtype=jnp.bfloat16)               # bf16 MXU weights

    params = dict(
        KP=KP,
        w1_oihw=w1, w2_oihw=w2,
        w1_col=taps_to_col(w1, in_planes),
        w2_col=taps_to_col(w2, planes),
        gamma1=jnp.ones((in_planes, 1), jnp.float32),
        beta1=jnp.zeros((in_planes, 1), jnp.float32),
        gamma2=jnp.ones((planes, 1), jnp.float32),
        beta2=jnp.zeros((planes, 1), jnp.float32),
    )
    if planes > in_planes:
        wnew = jax.random.normal(k3, (planes - in_planes, in_planes, 1, 1), jnp.float32) * 0.1
        eye_pad = np.zeros((planes, in_planes), np.float32)
        eye_pad[:in_planes, :in_planes] = np.eye(in_planes, dtype=np.float32)
        wnew_pad = np.zeros((planes, in_planes), np.float32)
        wnew_pad[in_planes:, :] = np.asarray(wnew)[:, :, 0, 0]
        params["wnew_oihw"] = wnew
        params["eye_pad"] = jnp.asarray(eye_pad)                  # f32: exact residual pass-through
        params["wnew_pad"] = jnp.asarray(wnew_pad)
    else:
        params["wnew_oihw"] = None
        params["eye_pad"] = None
        params["wnew_pad"] = None
    return params


def cv_block_forward(x, params, scaling_factor=1.0):
    """x: (N, C, H, W) float32 NCHW. Returns (N, planes, H_t, W_t) NCHW."""
    N, C, H, W = x.shape
    planes = params["gamma2"].shape[0]
    has_new = params["wnew_pad"] is not None
    KP = params["KP"]

    H_t = math.floor(H * scaling_factor)
    W_t = math.floor(W * scaling_factor)
    Hp, Wp = H_t + 2, W_t + 2                 # zero-padded spatial extent per image
    HpWp = Hp * Wp
    S = _round_up(HpWp, 128)                  # per-image lane stride: 128-aligned stores everywhere
    L = N * S                                 # flattened (batch, padded-spatial) lane count
    padl = 128                                # 128-lane edge pad keeps every interior store aligned
    ext = L + 2 * padl
    count = N * H_t * W_t                     # #pixels entering the BatchNorm statistics

    rimg, mask = _make_constants(N, H, W, H_t, W_t, Hp, Wp, S)    # cached host constants

    # Layout plumbing only: (N, C, H, W) -> (N*C, H*W) rows, cast once for the bf16 resample matmul.
    x2 = x.reshape(N * C, H * W).astype(jnp.bfloat16)

    kernel = _make_cv_block_kernel(N, C, planes, KP, Wp, HpWp, S, padl, L, ext, count, has_new)

    vspec = pl.BlockSpec(memory_space=pltpu.MemorySpace.VMEM)
    args = [x2, rimg, mask,
            params["gamma1"], params["beta1"], params["gamma2"], params["beta2"],
            params["w1_col"], params["w2_col"]]
    if has_new:
        args += [params["eye_pad"], params["wnew_pad"]]

    out_flat = pl.pallas_call(
        kernel,
        out_shape=jax.ShapeDtypeStruct((planes, L), jnp.float32),
        in_specs=[vspec] * len(args),
        out_specs=vspec,
        scratch_shapes=[pltpu.VMEM((C, L), jnp.float32),          # resized x in batch-lane layout
                        pltpu.VMEM((KP, ext), jnp.float32),       # relu(bn1(x)) padded buffer
                        pltpu.VMEM((KP, ext), jnp.float32),       # relu(bn2(conv1)) padded buffer
                        pltpu.VMEM((9 * KP, L), jnp.float32)],    # shared sublane-im2col scratch
    )(*args)

    # Layout plumbing back to NCHW: drop dead tail lanes + zero-pad ring, channels-first -> batch.
    out = out_flat.reshape(planes, N, S)[:, :, :HpWp]
    out = out.reshape(planes, N, Hp, Wp)[:, :, 1:1 + H_t, 1:1 + W_t]
    return jnp.transpose(out, (1, 0, 2, 3))


# ----------------------------- pure-JAX reference (NCHW, mirrors PyTorch) -----------------------------

def _conv_nchw(x, w, pad):
    return jax.lax.conv_general_dilated(
        x, w, window_strides=(1, 1), padding=((pad, pad), (pad, pad)),
        dimension_numbers=("NCHW", "OIHW", "NCHW"),
        precision=jax.lax.Precision.HIGHEST)


def _bn_train_nchw(x, gamma, beta):
    mean = jnp.mean(x, axis=(0, 2, 3), keepdims=True)
    var = jnp.mean((x - mean) ** 2, axis=(0, 2, 3), keepdims=True)
    return (x - mean) * jax.lax.rsqrt(var + EPS) * gamma.reshape(1, -1, 1, 1) + beta.reshape(1, -1, 1, 1)


def reference_forward(x, params, scaling_factor=1.0):
    N, C, H, W = x.shape
    H_t = math.floor(H * scaling_factor)
    W_t = math.floor(W * scaling_factor)
    Rh = jnp.asarray(make_resample_matrix(H, H_t))
    Rw = jnp.asarray(make_resample_matrix(W, W_t))
    xr = jnp.einsum("ih,nchw,jw->ncij", Rh, x, Rw, precision=jax.lax.Precision.HIGHEST)
    x1 = _bn_train_nchw(xr, params["gamma1"], params["beta1"])
    if params["wnew_oihw"] is not None:
        xcat = jnp.concatenate([xr, _conv_nchw(x1, params["wnew_oihw"], 0)], axis=1)
    else:
        xcat = xr
    out = _conv_nchw(jax.nn.relu(x1), params["w1_oihw"], 1)
    out = _conv_nchw(jax.nn.relu(_bn_train_nchw(out, params["gamma2"], params["beta2"])),
                     params["w2_oihw"], 1)
    return out + xcat


# ----------------------------- main -----------------------------

if __name__ == "__main__":
    key = jax.random.PRNGKey(0)
    N, in_planes, H, W = 2, 4, 16, 16
    planes = 8                      # planes > in_planes exercises the conv_new branch
    scaling_factor = 0.75           # H_t = W_t = 12

    kx, kp = jax.random.split(key)
    x = jax.random.normal(kx, (N, in_planes, H, W), jnp.float32)
    params = init_params(kp, in_planes, planes)

    out = cv_block_forward(x, params, scaling_factor)
    out = jax.block_until_ready(out)

    ref = reference_forward(x, params, scaling_factor)
    assert out.shape == ref.shape == (N, planes, 12, 12), (out.shape, ref.shape)
    assert bool(jnp.all(jnp.isfinite(out)))
    max_err = float(jnp.max(jnp.abs(out - ref)))
    # bf16 MXU inputs with f32 accumulation vs. an all-f32 HIGHEST-precision reference: expected
    # agreement ~1e-2; 5e-2 gives headroom while still catching real bugs.
    if max_err > 5e-2:
        raise AssertionError(f"Pallas result mismatch vs reference: max|diff|={max_err}")

    print("KERNEL_OK")
</pallas_src>

<mosaic_0001>
module attributes {stable_mosaic.version = 11 : i64} {
  func.func @kernel(%arg0: memref<8x256xbf16, #tpu.memory_space<vmem>>, %arg1: memref<256x196xbf16, #tpu.memory_space<vmem>>, %arg2: memref<1x512xf32, #tpu.memory_space<vmem>>, %arg3: memref<4x1xf32, #tpu.memory_space<vmem>>, %arg4: memref<4x1xf32, #tpu.memory_space<vmem>>, %arg5: memref<8x1xf32, #tpu.memory_space<vmem>>, %arg6: memref<8x1xf32, #tpu.memory_space<vmem>>, %arg7: memref<8x72xbf16, #tpu.memory_space<vmem>>, %arg8: memref<8x72xbf16, #tpu.memory_space<vmem>>, %arg9: memref<8x4xf32, #tpu.memory_space<vmem>>, %arg10: memref<8x4xf32, #tpu.memory_space<vmem>>, %arg11: memref<8x512xf32, #tpu.memory_space<vmem>>, %arg12: memref<4x512xf32, #tpu.memory_space<vmem>>, %arg13: memref<8x768xf32, #tpu.memory_space<vmem>>, %arg14: memref<8x768xf32, #tpu.memory_space<vmem>>, %arg15: memref<72x512xf32, #tpu.memory_space<vmem>>) attributes {dimension_semantics = [], scalar_prefetch = 0 : i64, scratch_operands = 4 : i64, tpu.core_type = #tpu.core_type<tc>} {
    %c0 = arith.constant 0 : index
    %c0_0 = arith.constant 0 : index
    %0 = vector.load %arg2[%c0, %c0_0] : memref<1x512xf32, #tpu.memory_space<vmem>>, vector<1x512xf32>
    %c0_1 = arith.constant 0 : index
    %c0_2 = arith.constant 0 : index
    %1 = vector.load %arg0[%c0_1, %c0_2] : memref<8x256xbf16, #tpu.memory_space<vmem>>, vector<8x256xbf16>
    %c0_3 = arith.constant 0 : index
    %c0_4 = arith.constant 0 : index
    %2 = vector.load %arg1[%c0_3, %c0_4] : memref<256x196xbf16, #tpu.memory_space<vmem>>, vector<256x196xbf16>
    %cst = arith.constant dense<0.000000e+00> : vector<8x196xf32>
    %3 = tpu.matmul %1, %2, %cst {dimension_numbers = #tpu.dot_dimension_numbers<[1], [0], [0], [1], [0, 0, 1, 1], [], []>} : vector<8x256xbf16>, vector<256x196xbf16>, vector<8x196xf32> -> vector<8x196xf32>
    %cst_5 = arith.constant 0.000000e+00 : f32
    %4 = vector.broadcast %cst_5 : f32 to vector<4x512xf32>
    %c0_6 = arith.constant 0 : index
    %c0_7 = arith.constant 0 : index
    %5 = vector.load %arg12[%c0_6, %c0_7] : memref<4x512xf32, #tpu.memory_space<vmem>>, vector<4x512xf32>
    tpu.vector_store %arg12[%c0_6, %c0_7], %4 {strides = array<i32>} : memref<4x512xf32, #tpu.memory_space<vmem>>, vector<4x512xf32>,
    %6 = vector.extract_strided_slice %3 {offsets = [0, 0], sizes = [4, 196], strides = [1, 1]} : vector<8x196xf32> to vector<4x196xf32>
    %c0_8 = arith.constant 0 : index
    %c0_9 = arith.constant 0 : index
    %7 = vector.load %arg12[%c0_8, %c0_9] : memref<4x512xf32, #tpu.memory_space<vmem>>, vector<4x196xf32>
    tpu.vector_store %arg12[%c0_8, %c0_9], %6 {strides = array<i32>} : memref<4x512xf32, #tpu.memory_space<vmem>>, vector<4x196xf32>,
    %8 = vector.extract_strided_slice %3 {offsets = [4, 0], sizes = [4, 196], strides = [1, 1]} : vector<8x196xf32> to vector<4x196xf32>
    %c0_10 = arith.constant 0 : index
    %c256 = arith.constant 256 : index
    %9 = vector.load %arg12[%c0_10, %c256] : memref<4x512xf32, #tpu.memory_space<vmem>>, vector<4x196xf32>
    tpu.vector_store %arg12[%c0_10, %c256], %8 {strides = array<i32>} : memref<4x512xf32, #tpu.memory_space<vmem>>, vector<4x196xf32>,
    %c0_11 = arith.constant 0 : index
    %c0_12 = arith.constant 0 : index
    %10 = vector.load %arg12[%c0_11, %c0_12] : memref<4x512xf32, #tpu.memory_space<vmem>>, vector<4x512xf32>
    %cst_13 = arith.constant dense<0.000000e+00> : vector<4xf32>
    %11 = vector.multi_reduction <add>, %10, %cst_13 [1] : vector<4x512xf32> to vector<4xf32>
    %12 = vector.shape_cast %11 : vector<4xf32> to vector<4x1xf32>
    %cst_14 = arith.constant 0.00347222225 : f32
    %13 = vector.broadcast %cst_14 : f32 to vector<4x1xf32>
    %14 = arith.mulf %12, %13 : vector<4x1xf32>
    %15 = vector.broadcast %14 : vector<4x1xf32> to vector<4x512xf32>
    %16 = arith.subf %10, %15 : vector<4x512xf32>
    %17 = vector.broadcast %0 : vector<1x512xf32> to vector<4x512xf32>
    %18 = arith.mulf %16, %17 : vector<4x512xf32>
    %19 = arith.mulf %18, %18 : vector<4x512xf32>
    %cst_15 = arith.constant dense<0.000000e+00> : vector<4xf32>
    %20 = vector.multi_reduction <add>, %19, %cst_15 [1] : vector<4x512xf32> to vector<4xf32>
    %21 = vector.shape_cast %20 : vector<4xf32> to vector<4x1xf32>
    %cst_16 = arith.constant 0.00347222225 : f32
    %22 = vector.broadcast %cst_16 : f32 to vector<4x1xf32>
    %23 = arith.mulf %21, %22 : vector<4x1xf32>
    %24 = vector.broadcast %14 : vector<4x1xf32> to vector<4x512xf32>
    %25 = arith.subf %10, %24 : vector<4x512xf32>
    %cst_17 = arith.constant 9.99999974E-6 : f32
    %26 = vector.broadcast %cst_17 : f32 to vector<4x1xf32>
    %27 = arith.addf %23, %26 : vector<4x1xf32>
    %28 = math.rsqrt %27 : vector<4x1xf32>
    %29 = vector.broadcast %28 : vector<4x1xf32> to vector<4x512xf32>
    %30 = arith.mulf %25, %29 : vector<4x512xf32>
    %c0_18 = arith.constant 0 : index
    %c0_19 = arith.constant 0 : index
    %31 = vector.load %arg3[%c0_18, %c0_19] : memref<4x1xf32, #tpu.memory_space<vmem>>, vector<4x1xf32>
    %32 = vector.broadcast %31 : vector<4x1xf32> to vector<4x512xf32>
    %33 = arith.mulf %30, %32 : vector<4x512xf32>
    %c0_20 = arith.constant 0 : index
    %c0_21 = arith.constant 0 : index
    %34 = vector.load %arg4[%c0_20, %c0_21] : memref<4x1xf32, #tpu.memory_space<vmem>>, vector<4x1xf32>
    %35 = vector.broadcast %34 : vector<4x1xf32> to vector<4x512xf32>
    %36 = arith.addf %33, %35 : vector<4x512xf32>
    %c0_22 = arith.constant 0 : index
    %c0_23 = arith.constant 0 : index
    %37 = vector.load %arg9[%c0_22, %c0_23] : memref<8x4xf32, #tpu.memory_space<vmem>>, vector<8x4xf32>
    %cst_24 = arith.constant dense<0.000000e+00> : vector<8x512xf32>
    %38 = tpu.matmul %37, %10, %cst_24 {dimension_numbers = #tpu.dot_dimension_numbers<[1], [0], [0], [1], [0, 0, 1, 1], [], []>} : vector<8x4xf32>, vector<4x512xf32>, vector<8x512xf32> -> vector<8x512xf32>
    %c0_25 = arith.constant 0 : index
    %c0_26 = arith.constant 0 : index
    %39 = vector.load %arg10[%c0_25, %c0_26] : memref<8x4xf32, #tpu.memory_space<vmem>>, vector<8x4xf32>
    %cst_27 = arith.constant dense<0.000000e+00> : vector<8x512xf32>
    %40 = tpu.matmul %39, %36, %cst_27 {dimension_numbers = #tpu.dot_dimension_numbers<[1], [0], [0], [1], [0, 0, 1, 1], [], []>} : vector<8x4xf32>, vector<4x512xf32>, vector<8x512xf32> -> vector<8x512xf32>
    %41 = arith.addf %38, %40 : vector<8x512xf32>
    %cst_28 = arith.constant 0.000000e+00 : f32
    %42 = vector.broadcast %cst_28 : f32 to vector<8x128xf32>
    %c0_29 = arith.constant 0 : index
    %c0_30 = arith.constant 0 : index
    %43 = vector.load %arg13[%c0_29, %c0_30] : memref<8x768xf32, #tpu.memory_space<vmem>>, vector<8x128xf32>
    tpu.vector_store %arg13[%c0_29, %c0_30], %42 {strides = array<i32>} : memref<8x768xf32, #tpu.memory_space<vmem>>, vector<8x128xf32>,
    %cst_31 = arith.constant 0.000000e+00 : f32
    %44 = vector.broadcast %cst_31 : f32 to vector<8x128xf32>
    %c0_32 = arith.constant 0 : index
    %c640 = arith.constant 640 : index
    %45 = vector.load %arg13[%c0_32, %c640] : memref<8x768xf32, #tpu.memory_space<vmem>>, vector<8x128xf32>
    tpu.vector_store %arg13[%c0_32, %c640], %44 {strides = array<i32>} : memref<8x768xf32, #tpu.memory_space<vmem>>, vector<8x128xf32>,
    %cst_33 = arith.constant 0.000000e+00 : f32
    %46 = vector.broadcast %cst_33 : f32 to vector<4x768xf32>
    %c4 = arith.constant 4 : index
    %c0_34 = arith.constant 0 : index
    %47 = vector.load %arg13[%c4, %c0_34] : memref<8x768xf32, #tpu.memory_space<vmem>>, vector<4x768xf32>
    tpu.vector_store %arg13[%c4, %c0_34], %46 {strides = array<i32>} : memref<8x768xf32, #tpu.memory_space<vmem>>, vector<4x768xf32>,
    %cst_35 = arith.constant 0.000000e+00 : f32
    %48 = vector.broadcast %cst_35 : f32 to vector<4x512xf32>
    %49 = arith.maximumf %36, %48 : vector<4x512xf32>
    %50 = vector.broadcast %0 : vector<1x512xf32> to vector<4x512xf32>
    %51 = arith.mulf %49, %50 : vector<4x512xf32>
    %c0_36 = arith.constant 0 : index
    %c128 = arith.constant 128 : index
    %52 = vector.load %arg13[%c0_36, %c128] : memref<8x768xf32, #tpu.memory_space<vmem>>, vector<4x512xf32>
    tpu.vector_store %arg13[%c0_36, %c128], %51 {strides = array<i32>} : memref<8x768xf32, #tpu.memory_space<vmem>>, vector<4x512xf32>,
    %c0_37 = arith.constant 0 : index
    %c113 = arith.constant 113 : index
    %53 = vector.load %arg13[%c0_37, %c113] : memref<8x768xf32, #tpu.memory_space<vmem>>, vector<8x512xf32>
    %c0_38 = arith.constant 0 : index
    %c0_39 = arith.constant 0 : index
    %54 = vector.load %arg15[%c0_38, %c0_39] : memref<72x512xf32, #tpu.memory_space<vmem>>, vector<8x512xf32>
    tpu.vector_store %arg15[%c0_38, %c0_39], %53 {strides = array<i32>} : memref<72x512xf32, #tpu.memory_space<vmem>>, vector<8x512xf32>,
    %c0_40 = arith.constant 0 : index
    %c114 = arith.constant 114 : index
    %55 = vector.load %arg13[%c0_40, %c114] : memref<8x768xf32, #tpu.memory_space<vmem>>, vector<8x512xf32>
    %c8 = arith.constant 8 : index
    %c0_41 = arith.constant 0 : index
    %56 = vector.load %arg15[%c8, %c0_41] : memref<72x512xf32, #tpu.memory_space<vmem>>, vector<8x512xf32>
    tpu.vector_store %arg15[%c8, %c0_41], %55 {strides = array<i32>} : memref<72x512xf32, #tpu.memory_space<vmem>>, vector<8x512xf32>,
    %c0_42 = arith.constant 0 : index
    %c115 = arith.constant 115 : index
    %57 = vector.load %arg13[%c0_42, %c115] : memref<8x768xf32, #tpu.memory_space<vmem>>, vector<8x512xf32>
    %c16 = arith.constant 16 : index
    %c0_43 = arith.constant 0 : index
    %58 = vector.load %arg15[%c16, %c0_43] : memref<72x512xf32, #tpu.memory_space<vmem>>, vector<8x512xf32>
    tpu.vector_store %arg15[%c16, %c0_43], %57 {strides = array<i32>} : memref<72x512xf32, #tpu.memory_space<vmem>>, vector<8x512xf32>,
    %c0_44 = arith.constant 0 : index
    %c127 = arith.constant 127 : index
    %59 = vector.load %arg13[%c0_44, %c127] : memref<8x768xf32, #tpu.memory_space<vmem>>, vector<8x512xf32>
    %c24 = arith.constant 24 : index
    %c0_45 = arith.constant 0 : index
    %60 = vector.load %arg15[%c24, %c0_45] : memref<72x512xf32, #tpu.memory_space<vmem>>, vector<8x512xf32>
    tpu.vector_store %arg15[%c24, %c0_45], %59 {strides = array<i32>} : memref<72x512xf32, #tpu.memory_space<vmem>>, vector<8x512xf32>,
    %c0_46 = arith.constant 0 : index
    %c128_47 = arith.constant 128 : index
    %61 = vector.load %arg13[%c0_46, %c128_47] : memref<8x768xf32, #tpu.memory_space<vmem>>, vector<8x512xf32>
    %c32 = arith.constant 32 : index
    %c0_48 = arith.constant 0 : index
    %62 = vector.load %arg15[%c32, %c0_48] : memref<72x512xf32, #tpu.memory_space<vmem>>, vector<8x512xf32>
    tpu.vector_store %arg15[%c32, %c0_48], %61 {strides = array<i32>} : memref<72x512xf32, #tpu.memory_space<vmem>>, vector<8x512xf32>,
    %c0_49 = arith.constant 0 : index
    %c129 = arith.constant 129 : index
    %63 = vector.load %arg13[%c0_49, %c129] : memref<8x768xf32, #tpu.memory_space<vmem>>, vector<8x512xf32>
    %c40 = arith.constant 40 : index
    %c0_50 = arith.constant 0 : index
    %64 = vector.load %arg15[%c40, %c0_50] : memref<72x512xf32, #tpu.memory_space<vmem>>, vector<8x512xf32>
    tpu.vector_store %arg15[%c40, %c0_50], %63 {strides = array<i32>} : memref<72x512xf32, #tpu.memory_space<vmem>>, vector<8x512xf32>,
    %c0_51 = arith.constant 0 : index
    %c141 = arith.constant 141 : index
    %65 = vector.load %arg13[%c0_51, %c141] : memref<8x768xf32, #tpu.memory_space<vmem>>, vector<8x512xf32>
    %c48 = arith.constant 48 : index
    %c0_52 = arith.constant 0 : index
    %66 = vector.load %arg15[%c48, %c0_52] : memref<72x512xf32, #tpu.memory_space<vmem>>, vector<8x512xf32>
    tpu.vector_store %arg15[%c48, %c0_52], %65 {strides = array<i32>} : memref<72x512xf32, #tpu.memory_space<vmem>>, vector<8x512xf32>,
    %c0_53 = arith.constant 0 : index
    %c142 = arith.constant 142 : index
    %67 = vector.load %arg13[%c0_53, %c142] : memref<8x768xf32, #tpu.memory_space<vmem>>, vector<8x512xf32>
    %c56 = arith.constant 56 : index
    %c0_54 = arith.constant 0 : index
    %68 = vector.load %arg15[%c56, %c0_54] : memref<72x512xf32, #tpu.memory_space<vmem>>, vector<8x512xf32>
    tpu.vector_store %arg15[%c56, %c0_54], %67 {strides = array<i32>} : memref<72x512xf32, #tpu.memory_space<vmem>>, vector<8x512xf32>,
    %c0_55 = arith.constant 0 : index
    %c143 = arith.constant 143 : index
    %69 = vector.load %arg13[%c0_55, %c143] : memref<8x768xf32, #tpu.memory_space<vmem>>, vector<8x512xf32>
    %c64 = arith.constant 64 : index
    %c0_56 = arith.constant 0 : index
    %70 = vector.load %arg15[%c64, %c0_56] : memref<72x512xf32, #tpu.memory_space<vmem>>, vector<8x512xf32>
    tpu.vector_store %arg15[%c64, %c0_56], %69 {strides = array<i32>} : memref<72x512xf32, #tpu.memory_space<vmem>>, vector<8x512xf32>,
    %c0_57 = arith.constant 0 : index
    %c0_58 = arith.constant 0 : index
    %71 = vector.load %arg7[%c0_57, %c0_58] : memref<8x72xbf16, #tpu.memory_space<vmem>>, vector<8x72xbf16>
    %c0_59 = arith.constant 0 : index
    %c0_60 = arith.constant 0 : index
    %72 = vector.load %arg15[%c0_59, %c0_60] : memref<72x512xf32, #tpu.memory_space<vmem>>, vector<72x512xf32>
    %73 = arith.truncf %72 : vector<72x512xf32> to vector<72x512xbf16>
    %cst_61 = arith.constant dense<0.000000e+00> : vector<8x512xf32>
    %74 = tpu.matmul %71, %73, %cst_61 {dimension_numbers = #tpu.dot_dimension_numbers<[1], [0], [0], [1], [0, 0, 1, 1], [], []>} : vector<8x72xbf16>, vector<72x512xbf16>, vector<8x512xf32> -> vector<8x512xf32>
    %75 = vector.broadcast %0 : vector<1x512xf32> to vector<8x512xf32>
    %76 = arith.mulf %74, %75 : vector<8x512xf32>
    %cst_62 = arith.constant dense<0.000000e+00> : vector<8xf32>
    %77 = vector.multi_reduction <add>, %76, %cst_62 [1] : vector<8x512xf32> to vector<8xf32>
    %78 = vector.shape_cast %77 : vector<8xf32> to vector<8x1xf32>
    %cst_63 = arith.constant 0.00347222225 : f32
    %79 = vector.broadcast %cst_63 : f32 to vector<8x1xf32>
    %80 = arith.mulf %78, %79 : vector<8x1xf32>
    %81 = vector.broadcast %80 : vector<8x1xf32> to vector<8x512xf32>
    %82 = arith.subf %74, %81 : vector<8x512xf32>
    %83 = vector.broadcast %0 : vector<1x512xf32> to vector<8x512xf32>
    %84 = arith.mulf %82, %83 : vector<8x512xf32>
    %85 = arith.mulf %84, %84 : vector<8x512xf32>
    %cst_64 = arith.constant dense<0.000000e+00> : vector<8xf32>
    %86 = vector.multi_reduction <add>, %85, %cst_64 [1] : vector<8x512xf32> to vector<8xf32>
    %87 = vector.shape_cast %86 : vector<8xf32> to vector<8x1xf32>
    %cst_65 = arith.constant 0.00347222225 : f32
    %88 = vector.broadcast %cst_65 : f32 to vector<8x1xf32>
    %89 = arith.mulf %87, %88 : vector<8x1xf32>
    %90 = vector.broadcast %80 : vector<8x1xf32> to vector<8x512xf32>
    %91 = arith.subf %74, %90 : vector<8x512xf32>
    %cst_66 = arith.constant 9.99999974E-6 : f32
    %92 = vector.broadcast %cst_66 : f32 to vector<8x1xf32>
    %93 = arith.addf %89, %92 : vector<8x1xf32>
    %94 = math.rsqrt %93 : vector<8x1xf32>
    %95 = vector.broadcast %94 : vector<8x1xf32> to vector<8x512xf32>
    %96 = arith.mulf %91, %95 : vector<8x512xf32>
    %c0_67 = arith.constant 0 : index
    %c0_68 = arith.constant 0 : index
    %97 = vector.load %arg5[%c0_67, %c0_68] : memref<8x1xf32, #tpu.memory_space<vmem>>, vector<8x1xf32>
    %98 = vector.broadcast %97 : vector<8x1xf32> to vector<8x512xf32>
    %99 = arith.mulf %96, %98 : vector<8x512xf32>
    %c0_69 = arith.constant 0 : index
    %c0_70 = arith.constant 0 : index
    %100 = vector.load %arg6[%c0_69, %c0_70] : memref<8x1xf32, #tpu.memory_space<vmem>>, vector<8x1xf32>
    %101 = vector.broadcast %100 : vector<8x1xf32> to vector<8x512xf32>
    %102 = arith.addf %99, %101 : vector<8x512xf32>
    %cst_71 = arith.constant 0.000000e+00 : f32
    %103 = vector.broadcast %cst_71 : f32 to vector<8x512xf32>
    %104 = arith.maximumf %102, %103 : vector<8x512xf32>
    %105 = vector.broadcast %0 : vector<1x512xf32> to vector<8x512xf32>
    %106 = arith.mulf %104, %105 : vector<8x512xf32>
    %cst_72 = arith.constant 0.000000e+00 : f32
    %107 = vector.broadcast %cst_72 : f32 to vector<8x128xf32>
    %c0_73 = arith.constant 0 : index
    %c0_74 = arith.constant 0 : index
    %108 = vector.load %arg14[%c0_73, %c0_74] : memref<8x768xf32, #tpu.memory_space<vmem>>, vector<8x128xf32>
    tpu.vector_store %arg14[%c0_73, %c0_74], %107 {strides = array<i32>} : memref<8x768xf32, #tpu.memory_space<vmem>>, vector<8x128xf32>,
    %cst_75 = arith.constant 0.000000e+00 : f32
    %109 = vector.broadcast %cst_75 : f32 to vector<8x128xf32>
    %c0_76 = arith.constant 0 : index
    %c640_77 = arith.constant 640 : index
    %110 = vector.load %arg14[%c0_76, %c640_77] : memref<8x768xf32, #tpu.memory_space<vmem>>, vector<8x128xf32>
    tpu.vector_store %arg14[%c0_76, %c640_77], %109 {strides = array<i32>} : memref<8x768xf32, #tpu.memory_space<vmem>>, vector<8x128xf32>,
    %c0_78 = arith.constant 0 : index
    %c128_79 = arith.constant 128 : index
    %111 = vector.load %arg14[%c0_78, %c128_79] : memref<8x768xf32, #tpu.memory_space<vmem>>, vector<8x512xf32>
    tpu.vector_store %arg14[%c0_78, %c128_79], %106 {strides = array<i32>} : memref<8x768xf32, #tpu.memory_space<vmem>>, vector<8x512xf32>,
    %c0_80 = arith.constant 0 : index
    %c113_81 = arith.constant 113 : index
    %112 = vector.load %arg14[%c0_80, %c113_81] : memref<8x768xf32, #tpu.memory_space<vmem>>, vector<8x512xf32>
    %c0_82 = arith.constant 0 : index
    %c0_83 = arith.constant 0 : index
    %113 = vector.load %arg15[%c0_82, %c0_83] : memref<72x512xf32, #tpu.memory_space<vmem>>, vector<8x512xf32>
    tpu.vector_store %arg15[%c0_82, %c0_83], %112 {strides = array<i32>} : memref<72x512xf32, #tpu.memory_space<vmem>>, vector<8x512xf32>,
    %c0_84 = arith.constant 0 : index
    %c114_85 = arith.constant 114 : index
    %114 = vector.load %arg14[%c0_84, %c114_85] : memref<8x768xf32, #tpu.memory_space<vmem>>, vector<8x512xf32>
    %c8_86 = arith.constant 8 : index
    %c0_87 = arith.constant 0 : index
    %115 = vector.load %arg15[%c8_86, %c0_87] : memref<72x512xf32, #tpu.memory_space<vmem>>, vector<8x512xf32>
    tpu.vector_store %arg15[%c8_86, %c0_87], %114 {strides = array<i32>} : memref<72x512xf32, #tpu.memory_space<vmem>>, vector<8x512xf32>,
    %c0_88 = arith.constant 0 : index
    %c115_89 = arith.constant 115 : index
    %116 = vector.load %arg14[%c0_88, %c115_89] : memref<8x768xf32, #tpu.memory_space<vmem>>, vector<8x512xf32>
    %c16_90 = arith.constant 16 : index
    %c0_91 = arith.constant 0 : index
    %117 = vector.load %arg15[%c16_90, %c0_91] : memref<72x512xf32, #tpu.memory_space<vmem>>, vector<8x512xf32>
    tpu.vector_store %arg15[%c16_90, %c0_91], %116 {strides = array<i32>} : memref<72x512xf32, #tpu.memory_space<vmem>>, vector<8x512xf32>,
    %c0_92 = arith.constant 0 : index
    %c127_93 = arith.constant 127 : index
    %118 = vector.load %arg14[%c0_92, %c127_93] : memref<8x768xf32, #tpu.memory_space<vmem>>, vector<8x512xf32>
    %c24_94 = arith.constant 24 : index
    %c0_95 = arith.constant 0 : index
    %119 = vector.load %arg15[%c24_94, %c0_95] : memref<72x512xf32, #tpu.memory_space<vmem>>, vector<8x512xf32>
    tpu.vector_store %arg15[%c24_94, %c0_95], %118 {strides = array<i32>} : memref<72x512xf32, #tpu.memory_space<vmem>>, vector<8x512xf32>,
    %c0_96 = arith.constant 0 : index
    %c128_97 = arith.constant 128 : index
    %120 = vector.load %arg14[%c0_96, %c128_97] : memref<8x768xf32, #tpu.memory_space<vmem>>, vector<8x512xf32>
    %c32_98 = arith.constant 32 : index
    %c0_99 = arith.constant 0 : index
    %121 = vector.load %arg15[%c32_98, %c0_99] : memref<72x512xf32, #tpu.memory_space<vmem>>, vector<8x512xf32>
    tpu.vector_store %arg15[%c32_98, %c0_99], %120 {strides = array<i32>} : memref<72x512xf32, #tpu.memory_space<vmem>>, vector<8x512xf32>,
    %c0_100 = arith.constant 0 : index
    %c129_101 = arith.constant 129 : index
    %122 = vector.load %arg14[%c0_100, %c129_101] : memref<8x768xf32, #tpu.memory_space<vmem>>, vector<8x512xf32>
    %c40_102 = arith.constant 40 : index
    %c0_103 = arith.constant 0 : index
    %123 = vector.load %arg15[%c40_102, %c0_103] : memref<72x512xf32, #tpu.memory_space<vmem>>, vector<8x512xf32>
    tpu.vector_store %arg15[%c40_102, %c0_103], %122 {strides = array<i32>} : memref<72x512xf32, #tpu.memory_space<vmem>>, vector<8x512xf32>,
    %c0_104 = arith.constant 0 : index
    %c141_105 = arith.constant 141 : index
    %124 = vector.load %arg14[%c0_104, %c141_105] : memref<8x768xf32, #tpu.memory_space<vmem>>, vector<8x512xf32>
    %c48_106 = arith.constant 48 : index
    %c0_107 = arith.constant 0 : index
    %125 = vector.load %arg15[%c48_106, %c0_107] : memref<72x512xf32, #tpu.memory_space<vmem>>, vector<8x512xf32>
    tpu.vector_store %arg15[%c48_106, %c0_107], %124 {strides = array<i32>} : memref<72x512xf32, #tpu.memory_space<vmem>>, vector<8x512xf32>,
    %c0_108 = arith.constant 0 : index
    %c142_109 = arith.constant 142 : index
    %126 = vector.load %arg14[%c0_108, %c142_109] : memref<8x768xf32, #tpu.memory_space<vmem>>, vector<8x512xf32>
    %c56_110 = arith.constant 56 : index
    %c0_111 = arith.constant 0 : index
    %127 = vector.load %arg15[%c56_110, %c0_111] : memref<72x512xf32, #tpu.memory_space<vmem>>, vector<8x512xf32>
    tpu.vector_store %arg15[%c56_110, %c0_111], %126 {strides = array<i32>} : memref<72x512xf32, #tpu.memory_space<vmem>>, vector<8x512xf32>,
    %c0_112 = arith.constant 0 : index
    %c143_113 = arith.constant 143 : index
    %128 = vector.load %arg14[%c0_112, %c143_113] : memref<8x768xf32, #tpu.memory_space<vmem>>, vector<8x512xf32>
    %c64_114 = arith.constant 64 : index
    %c0_115 = arith.constant 0 : index
    %129 = vector.load %arg15[%c64_114, %c0_115] : memref<72x512xf32, #tpu.memory_space<vmem>>, vector<8x512xf32>
    tpu.vector_store %arg15[%c64_114, %c0_115], %128 {strides = array<i32>} : memref<72x512xf32, #tpu.memory_space<vmem>>, vector<8x512xf32>,
    %c0_116 = arith.constant 0 : index
    %c0_117 = arith.constant 0 : index
    %130 = vector.load %arg8[%c0_116, %c0_117] : memref<8x72xbf16, #tpu.memory_space<vmem>>, vector<8x72xbf16>
    %c0_118 = arith.constant 0 : index
    %c0_119 = arith.constant 0 : index
    %131 = vector.load %arg15[%c0_118, %c0_119] : memref<72x512xf32, #tpu.memory_space<vmem>>, vector<72x512xf32>
    %132 = arith.truncf %131 : vector<72x512xf32> to vector<72x512xbf16>
    %cst_120 = arith.constant dense<0.000000e+00> : vector<8x512xf32>
    %133 = tpu.matmul %130, %132, %cst_120 {dimension_numbers = #tpu.dot_dimension_numbers<[1], [0], [0], [1], [0, 0, 1, 1], [], []>} : vector<8x72xbf16>, vector<72x512xbf16>, vector<8x512xf32> -> vector<8x512xf32>
    %134 = arith.addf %133, %41 : vector<8x512xf32>
    %c0_121 = arith.constant 0 : index
    %c0_122 = arith.constant 0 : index
    %135 = vector.load %arg11[%c0_121, %c0_122] : memref<8x512xf32, #tpu.memory_space<vmem>>, vector<8x512xf32>
    tpu.vector_store %arg11[%c0_121, %c0_122], %134 {strides = array<i32>} : memref<8x512xf32, #tpu.memory_space<vmem>>, vector<8x512xf32>,
    return
  }
}

</mosaic_0001>

<llo_original>
// kernel: tpu_custom_call.1
$region0: #{tpu_custom_call.1}
  #allocation0 [shape = 'u32[]', space=smem, size = 0x4, offset = 0x4, fixed_abs, tag = 'smem constant byte address 0x4 - core index']
  #allocation1 [shape = 'u32[144,128]{1,0:T(1,128)}', space=vmem, size = 0x12000, scoped, tag = 'internal scratch']
  #allocation2 [shape = 'f32[4,512]{1,0:T(4,128)}', space=vmem, size = 0x2000, scoped, tag = 'scratch operand']
  #allocation3 [shape = 'f32[8,768]{1,0:T(8,128)}', space=vmem, size = 0x6000, scoped, tag = 'scratch operand']
  #allocation4 [shape = 'f32[8,768]{1,0:T(8,128)}', space=vmem, size = 0x6000, scoped, tag = 'scratch operand']
  #allocation5 [shape = 'f32[72,512]{1,0:T(8,128)}', space=vmem, size = 0x24000, scoped, tag = 'scratch operand']
  %s0 = inlined_call_operand.vmem [shape: bf16[8,256], index: 0, kind: input, shape index: {}]
  %s1 = inlined_call_operand.vmem [shape: bf16[256,196], index: 1, kind: input, shape index: {}]
  %s2 = inlined_call_operand.vmem [shape: f32[1,512], index: 2, kind: input, shape index: {}]
  %s3 = inlined_call_operand.vmem [shape: f32[4,1], index: 3, kind: input, shape index: {}]
  %s4 = inlined_call_operand.vmem [shape: f32[4,1], index: 4, kind: input, shape index: {}]
  %s5 = inlined_call_operand.vmem [shape: f32[8,1], index: 5, kind: input, shape index: {}]
  %s6 = inlined_call_operand.vmem [shape: f32[8,1], index: 6, kind: input, shape index: {}]
  %s7 = inlined_call_operand.vmem [shape: bf16[8,72], index: 7, kind: input, shape index: {}]
  %s8 = inlined_call_operand.vmem [shape: bf16[8,72], index: 8, kind: input, shape index: {}]
  %s9 = inlined_call_operand.vmem [shape: f32[8,4], index: 9, kind: input, shape index: {}]
  %s10 = inlined_call_operand.vmem [shape: f32[8,4], index: 10, kind: input, shape index: {}]
  %s11 = inlined_call_operand.hbm [shape: f32[8,512], index: 11, kind: output, shape index: {}]
  %s12 = sld [smem:[#allocation0]]
  $region54: #{tpu_custom_call.1} parent=0
    _
  %s14 = ssub.s32 1, %s12
  %s15 = scalar_select 0, %s14, %s12
  $region1: #{tpu_custom_call.1} parent=0
    #allocation6 [shape = 'u8[16384]{0}', space=vmem, size = 0x4000, scoped, tag = 'output window, operand 0, single buffered']
    #allocation7 [shape = 's32[1]{0}', space=sflag, size = 0x4, scoped, tag = 'scoped memory for tpu_custom_call.1']
    %16 = vsyncpa [#allocation7], 0
    // Predicated region
    $region2: #{tpu_custom_call.1} parent=1 // pred_check
      _
    $region3: #{tpu_custom_call.1} parent=1 // pred_check_branch
      %18 = sbr.rel (0) target = $region5
    $region4: #{tpu_custom_call.1} parent=1 // pred_region
      _
    $region5: #{tpu_custom_call.1} parent=1 // pred_fallthru
      _
    // Predicated region
    $region6: #{tpu_custom_call.1} parent=1 // pred_check
      _
    $region7: #{tpu_custom_call.1} parent=1 // pred_check_branch
      %20 = sbr.rel (0) target = $region9
    $region8: #{tpu_custom_call.1} parent=1 // pred_region
      _
    $region9: #{tpu_custom_call.1} parent=1 // pred_fallthru
      _
    // Predicated region
    $region10: #{tpu_custom_call.1} parent=1 // pred_check
      _
    $region11: #{tpu_custom_call.1} parent=1 // pred_check_branch
      %22 = sbr.rel (0) target = $region13
    $region12: #{tpu_custom_call.1} parent=1 // pred_region
      _
    $region13: #{tpu_custom_call.1} parent=1 // pred_fallthru
      _
    // Predicated region
    $region14: #{tpu_custom_call.1} parent=1 // pred_check
      _
    $region15: #{tpu_custom_call.1} parent=1 // pred_check_branch
      %24 = sbr.rel (0) target = $region17
    $region16: #{tpu_custom_call.1} parent=1 // pred_region
      _
    $region17: #{tpu_custom_call.1} parent=1 // pred_fallthru
      _
    // Predicated region
    $region18: #{tpu_custom_call.1} parent=1 // pred_check
      _
    $region19: #{tpu_custom_call.1} parent=1 // pred_check_branch
      %26 = sbr.rel (0) target = $region21
    $region20: #{tpu_custom_call.1} parent=1 // pred_region
      _
    $region21: #{tpu_custom_call.1} parent=1 // pred_fallthru
      _
    // Predicated region
    $region22: #{tpu_custom_call.1} parent=1 // pred_check
      _
    $region23: #{tpu_custom_call.1} parent=1 // pred_check_branch
      %28 = sbr.rel (0) target = $region25
    $region24: #{tpu_custom_call.1} parent=1 // pred_region
      _
    $region25: #{tpu_custom_call.1} parent=1 // pred_fallthru
      _
    // Predicated region
    $region26: #{tpu_custom_call.1} parent=1 // pred_check
      _
    $region27: #{tpu_custom_call.1} parent=1 // pred_check_branch
      %30 = sbr.rel (0) target = $region29
    $region28: #{tpu_custom_call.1} parent=1 // pred_region
      _
    $region29: #{tpu_custom_call.1} parent=1 // pred_fallthru
      _
    // Predicated region
    $region30: #{tpu_custom_call.1} parent=1 // pred_check
      _
    $region31: #{tpu_custom_call.1} parent=1 // pred_check_branch
      %32 = sbr.rel (0) target = $region33
    $region32: #{tpu_custom_call.1} parent=1 // pred_region
      _
    $region33: #{tpu_custom_call.1} parent=1 // pred_fallthru
      _
    // Predicated region
    $region34: #{tpu_custom_call.1} parent=1 // pred_check
      _
    $region35: #{tpu_custom_call.1} parent=1 // pred_check_branch
      %34 = sbr.rel (0) target = $region37
    $region36: #{tpu_custom_call.1} parent=1 // pred_region
      _
    $region37: #{tpu_custom_call.1} parent=1 // pred_fallthru
      _
    // Predicated region
    $region38: #{tpu_custom_call.1} parent=1 // pred_check
      _
    $region39: #{tpu_custom_call.1} parent=1 // pred_check_branch
      %36 = sbr.rel (0) target = $region41
    $region40: #{tpu_custom_call.1} parent=1 // pred_region
      _
    $region41: #{tpu_custom_call.1} parent=1 // pred_fallthru
      _
    // Predicated region
    $region42: #{tpu_custom_call.1} parent=1 // pred_check
      _
    $region43: #{tpu_custom_call.1} parent=1 // pred_check_branch
      %38 = sbr.rel (0) target = $region45
    $region44: #{tpu_custom_call.1} parent=1 // pred_region
      _
    $region45: #{tpu_custom_call.1} parent=1 // pred_fallthru
      _
    %v40 = vld [vmem:[%s2] sm:$0xf]
    %v41 = vld [vmem:[%s0] sm:$0xff]
    %v42 = vld [vmem:[%s1] sm:$0xff]
    %v43 = vld [vmem:[%s1 + $0x8] sm:$0xff]
    %v44 = vld [vmem:[%s1 + $0x10] sm:$0xff]
    %v45 = vld [vmem:[%s1 + $0x18] sm:$0xff]
    %v46 = vld [vmem:[%s1 + $0x20] sm:$0xff]
    %v47 = vld [vmem:[%s1 + $0x28] sm:$0xff]
    %v48 = vld [vmem:[%s1 + $0x30] sm:$0xff]
    %v49 = vld [vmem:[%s1 + $0x38] sm:$0xff]
    %v50 = vld [vmem:[%s1 + $0x40] sm:$0xff]
    %v51 = vld [vmem:[%s1 + $0x48] sm:$0xff]
    %v52 = vld [vmem:[%s1 + $0x50] sm:$0xff]
    %v53 = vld [vmem:[%s1 + $0x58] sm:$0xff]
    %v54 = vld [vmem:[%s1 + $0x60] sm:$0xff]
    %v55 = vld [vmem:[%s1 + $0x68] sm:$0xff]
    %v56 = vld [vmem:[%s1 + $0x70] sm:$0xff]
    %v57 = vld [vmem:[%s1 + $0x78] sm:$0xff]
    %v58 = vld [vmem:[%s1 + $0x80] sm:$0xff]
    %v59 = vld [vmem:[%s1 + $0x88] sm:$0xff]
    %v60 = vld [vmem:[%s1 + $0x90] sm:$0xff]
    %v61 = vld [vmem:[%s1 + $0x98] sm:$0xff]
    %v62 = vld [vmem:[%s1 + $0xa0] sm:$0xff]
    %v63 = vld [vmem:[%s1 + $0xa8] sm:$0xff]
    %v64 = vld [vmem:[%s1 + $0xb0] sm:$0xff]
    %v65 = vld [vmem:[%s1 + $0xb8] sm:$0xff]
    %v66 = vld [vmem:[%s1 + $0xc0] sm:$0xff]
    %v67 = vld [vmem:[%s1 + $0xc8] sm:$0xff]
    %v68 = vld [vmem:[%s1 + $0xd0] sm:$0xff]
    %v69 = vld [vmem:[%s1 + $0xd8] sm:$0xff]
    %v70 = vld [vmem:[%s1 + $0xe0] sm:$0xff]
    %v71 = vld [vmem:[%s1 + $0xe8] sm:$0xff]
    %v72 = vld [vmem:[%s1 + $0xf0] sm:$0xff]
    %v73 = vld [vmem:[%s1 + $0xf8] sm:$0xff]
    %v75 = vunpack.c.l.b16 %v41
    %v76 = vunpack.c.h.b16 %v41
    %v77 = vpack.c.b16 %v75, %v75
    %v78 = vpack.c.b16 %v76, %v76
    %v113 = vunpack.c.l.b16 %v42
    %v114 = vunpack.c.h.b16 %v42
    %v115 = vunpack.c.l.b16 %v43
    %v116 = vunpack.c.h.b16 %v43
    %v117 = vunpack.c.l.b16 %v44
    %v118 = vunpack.c.h.b16 %v44
    %v119 = vunpack.c.l.b16 %v45
    %v120 = vunpack.c.h.b16 %v45
    %v121 = vunpack.c.l.b16 %v46
    %v122 = vunpack.c.h.b16 %v46
    %v123 = vunpack.c.l.b16 %v47
    %v124 = vunpack.c.h.b16 %v47
    %v125 = vunpack.c.l.b16 %v48
    %v126 = vunpack.c.h.b16 %v48
    %v127 = vunpack.c.l.b16 %v49
    %v128 = vunpack.c.h.b16 %v49
    %v129 = vunpack.c.l.b16 %v50
    %v130 = vunpack.c.h.b16 %v50
    %v131 = vunpack.c.l.b16 %v51
    %v132 = vunpack.c.h.b16 %v51
    %v133 = vunpack.c.l.b16 %v52
    %v134 = vunpack.c.h.b16 %v52
    %v135 = vunpack.c.l.b16 %v53
    %v136 = vunpack.c.h.b16 %v53
    %v137 = vunpack.c.l.b16 %v54
    %v138 = vunpack.c.h.b16 %v54
    %v139 = vunpack.c.l.b16 %v55
    %v140 = vunpack.c.h.b16 %v55
    %v141 = vunpack.c.l.b16 %v56
    %v142 = vunpack.c.h.b16 %v56
    %v143 = vunpack.c.l.b16 %v57
    %v144 = vunpack.c.h.b16 %v57
    %v145 = vunpack.c.l.b16 %v58
    %v146 = vunpack.c.h.b16 %v58
    %v147 = vunpack.c.l.b16 %v59
    %v148 = vunpack.c.h.b16 %v59
    %v149 = vunpack.c.l.b16 %v60
    %v150 = vunpack.c.h.b16 %v60
    %v151 = vunpack.c.l.b16 %v61
    %v152 = vunpack.c.h.b16 %v61
    %v153 = vunpack.c.l.b16 %v62
    %v154 = vunpack.c.h.b16 %v62
    %v155 = vunpack.c.l.b16 %v63
    %v156 = vunpack.c.h.b16 %v63
    %v157 = vunpack.c.l.b16 %v64
    %v158 = vunpack.c.h.b16 %v64
    %v159 = vunpack.c.l.b16 %v65
    %v160 = vunpack.c.h.b16 %v65
    %v161 = vunpack.c.l.b16 %v66
    %v162 = vunpack.c.h.b16 %v66
    %v163 = vunpack.c.l.b16 %v67
    %v164 = vunpack.c.h.b16 %v67
    %v165 = vunpack.c.l.b16 %v68
    %v166 = vunpack.c.h.b16 %v68
    %v167 = vunpack.c.l.b16 %v69
    %v168 = vunpack.c.h.b16 %v69
    %v169 = vunpack.c.l.b16 %v70
    %v170 = vunpack.c.h.b16 %v70
    %v171 = vunpack.c.l.b16 %v71
    %v172 = vunpack.c.h.b16 %v71
    %v173 = vunpack.c.l.b16 %v72
    %v174 = vunpack.c.h.b16 %v72
    %v175 = vunpack.c.l.b16 %v73
    %v176 = vunpack.c.h.b16 %v73
    %v177 = vpack.c.b16 %v115, %v113
    %v178 = vpack.c.b16 %v116, %v114
    %v179 = vpack.c.b16 %v119, %v117
    %v180 = vpack.c.b16 %v120, %v118
    %v181 = vpack.c.b16 %v123, %v121
    %v182 = vpack.c.b16 %v124, %v122
    %v183 = vpack.c.b16 %v127, %v125
    %v184 = vpack.c.b16 %v128, %v126
    %v185 = vpack.c.b16 %v131, %v129
    %v186 = vpack.c.b16 %v132, %v130
    %v187 = vpack.c.b16 %v135, %v133
    %v188 = vpack.c.b16 %v136, %v134
    %v189 = vpack.c.b16 %v139, %v137
    %v190 = vpack.c.b16 %v140, %v138
    %v191 = vpack.c.b16 %v143, %v141
    %v192 = vpack.c.b16 %v144, %v142
    %v193 = vpack.c.b16 %v147, %v145
    %v194 = vpack.c.b16 %v148, %v146
    %v195 = vpack.c.b16 %v151, %v149
    %v196 = vpack.c.b16 %v152, %v150
    %v197 = vpack.c.b16 %v155, %v153
    %v198 = vpack.c.b16 %v156, %v154
    %v199 = vpack.c.b16 %v159, %v157
    %v200 = vpack.c.b16 %v160, %v158
    %v201 = vpack.c.b16 %v163, %v161
    %v202 = vpack.c.b16 %v164, %v162
    %v203 = vpack.c.b16 %v167, %v165
    %v204 = vpack.c.b16 %v168, %v166
    %v205 = vpack.c.b16 %v171, %v169
    %v206 = vpack.c.b16 %v172, %v170
    %v207 = vpack.c.b16 %v175, %v173
    %v208 = vpack.c.b16 %v176, %v174
    %241 = vmatprep.subr.bf16.mxu0 %v178
    %242 = vmatpush1.bf16.msra.mxu0 %v177
    %243 = vmatprep.subr.bf16.mxu0 %v180
    %244 = vmatpush1.bf16.msra.mxu0 %v179
    %245 = vmatprep.subr.bf16.mxu0 %v182
    %246 = vmatpush1.bf16.msra.mxu0 %v181
    %247 = vmatprep.subr.bf16.mxu0 %v184
    %248 = vmatpush1.bf16.msra.mxu0 %v183
    %249 = vmatprep.subr.bf16.mxu0 %v186
    %250 = vmatpush1.bf16.msra.mxu0 %v185
    %251 = vmatprep.subr.bf16.mxu0 %v188
    %252 = vmatpush1.bf16.msra.mxu0 %v187
    %253 = vmatprep.subr.bf16.mxu0 %v190
    %254 = vmatpush1.bf16.msra.mxu0 %v189
    %255 = vmatprep.subr.bf16.mxu0 %v192
    %256 = vmatpush1.bf16.msra.mxu0 %v191
    %257 = vmatprep.subr.bf16.mxu0 %v194
    %258 = vmatpush1.bf16.msra.mxu0 %v193
    %259 = vmatprep.subr.bf16.mxu0 %v196
    %260 = vmatpush1.bf16.msra.mxu0 %v195
    %261 = vmatprep.subr.bf16.mxu0 %v198
    %262 = vmatpush1.bf16.msra.mxu0 %v197
    %263 = vmatprep.subr.bf16.mxu0 %v200
    %264 = vmatpush1.bf16.msra.mxu0 %v199
    %265 = vmatprep.subr.bf16.mxu0 %v202
    %266 = vmatpush1.bf16.msra.mxu0 %v201
    %267 = vmatprep.subr.bf16.mxu0 %v204
    %268 = vmatpush1.bf16.msra.mxu0 %v203
    %269 = vmatprep.subr.bf16.mxu0 %v206
    %270 = vmatpush1.bf16.msra.mxu0 %v205
    %271 = vmatprep.subr.bf16.mxu0 %v208
    %272 = vmatpush1.bf16.msra.mxu0 %v207
    %273 = vmatprep.mubr.bf16.mxu0 %v78
    %274 = vmatmul.mubr.bf16.gmra.mrb[0].mxu0 %v77
    %v275 = vpop.f32.mrb[0].mxu0
    %v276 = vadd.f32 0.0, %v275
    %v277 = vpop.f32.mrb[0].mxu0
    %v278 = vadd.f32 0.0, %v277
    %v279 = vpop.f32.mrb[0].mxu0
    %v280 = vpop.f32.mrb[0].mxu0
    %281 = vdwg.mxu0
    %282 = vst [vmem:[#allocation2] sm:$0xff] 0.0
    %283 = vst [vmem:[#allocation2 + $0x8] sm:$0xff] 0.0
    %v286 = vcombine.low %v276, %v278
    %vm288 = vcmask 1043456
    %vm289 = vcmask 556036
    %vm290 = vmor %vm289, %vm288
    %291 = vst.msk [vmem:[#allocation2] sm:$0xff] %vm290, %v286
    %v292 = vcombine.high %v276, %v278
    %294 = vst.msk [vmem:[#allocation2 + $0x8] sm:$0xff] %vm290, %v292
    %v295 = vld [vmem:[#allocation2] sm:$0xff]
    %v296 = vld [vmem:[#allocation2 + $0x8] sm:$0xff]
    %v299 = vcombine.high %v295, %v295
    %v300 = vcombine.high %v296, %v296
    %v303 = vsel %vm288, %v295, 0.0
    %v304 = vsel %vm288, %v299, 0.0
    %v305 = vadd.f32 %v303, %v304
    %v306 = vsel %vm288, %v296, 0.0
    %v307 = vadd.f32 %v305, %v306
    %v308 = vsel %vm288, %v300, 0.0
    %v309 = vadd.f32 %v307, %v308
    %310 = vadd.xlane.f32.xlu0 %v309
    %v311 = vpop.xlane.xlu0 %310
    %v312 = vmul.f32 %v311, 0.0034722222
    %v315 = vunpack.c.l.s4 839922192
    %v316 = vunpack.c.0.s8 %v315
    %v317 = vlaneseq
    %v318 = vshrl.u32 %v317, 7
    %v319 = vsub.s32 %v316, %v318
    %v320 = vrot.slane %v312, %v319
    %v322 = vsub.f32 %v295, %v320
    %v323 = vsub.f32 %v296, %v320
    %v325 = vlaneseq
    %v326 = vshrl.u32 %v325, 7
    %v327 = vsub.s32 0, %v326
    %v328 = vrot.slane %v40, %v327
    %v329 = vlaneseq
    %v330 = vshrl.u32 %v329, 7
    %v331 = vsub.s32 1, %v330
    %v332 = vrot.slane %v40, %v331
    %v333 = vlaneseq
    %v334 = vshrl.u32 %v333, 7
    %v335 = vsub.s32 2, %v334
    %v336 = vrot.slane %v40, %v335
    %v337 = vlaneseq
    %v338 = vshrl.u32 %v337, 7
    %v339 = vsub.s32 3, %v338
    %v340 = vrot.slane %v40, %v339
    %v341 = vcombine.low %v328, %v332
    %v342 = vcombine.low %v336, %v340
    %v345 = vmul.f32 %v322, %v341
    %v346 = vmul.f32 %v323, %v342
    %v347 = vmul.f32 %v345, %v345
    %v348 = vmul.f32 %v346, %v346
    %v351 = vcombine.high %v347, %v347
    %v352 = vcombine.high %v348, %v348
    %v355 = vsel %vm288, %v347, 0.0
    %v356 = vsel %vm288, %v351, 0.0
    %v357 = vadd.f32 %v355, %v356
    %v358 = vsel %vm288, %v348, 0.0
    %v359 = vadd.f32 %v357, %v358
    %v360 = vsel %vm288, %v352, 0.0
    %v361 = vadd.f32 %v359, %v360
    %362 = vadd.xlane.f32.xlu0 %v361
    %v363 = vpop.xlane.xlu0 %362
    %v364 = vmul.f32 %v363, 0.0034722222
    %v365 = vadd.f32 %v364, 1e-05
    %v366 = vrsqrt.pop %v365
    %v369 = vunpack.c.l.s4 839922192
    %v370 = vunpack.c.0.s8 %v369
    %v371 = vlaneseq
    %v372 = vshrl.u32 %v371, 7
    %v373 = vsub.s32 %v370, %v372
    %v374 = vrot.slane %v366, %v373
    %v376 = vmul.f32 %v322, %v374
    %v377 = vmul.f32 %v323, %v374
    %v378 = vld [vmem:[%s3] sm:$0xf]
    %380 = vset.pattern.permute.xlu0 0
    %381 = vperm.xlu0 %380, %v378
    %v382 = vpop.permute.xlu0 %381
    %v384 = vunpack.c.l.s4 839922192
    %v385 = vunpack.c.0.s8 %v384
    %v386 = vlaneseq
    %v387 = vshrl.u32 %v386, 7
    %v388 = vsub.s32 %v385, %v387
    %v389 = vrot.slane %v382, %v388
    %v391 = vmul.f32 %v376, %v389
    %v392 = vmul.f32 %v377, %v389
    %v393 = vld [vmem:[%s4] sm:$0xf]
    %395 = vset.pattern.permute.xlu0 0
    %396 = vperm.xlu0 %395, %v393
    %v397 = vpop.permute.xlu0 %396
    %v399 = vunpack.c.l.s4 839922192
    %v400 = vunpack.c.0.s8 %v399
    %v401 = vlaneseq
    %v402 = vshrl.u32 %v401, 7
    %v403 = vsub.s32 %v400, %v402
    %v404 = vrot.slane %v397, %v403
    %v406 = vadd.f32 %v391, %v404
    %v407 = vadd.f32 %v392, %v404
    %v408 = vld [vmem:[%s9] sm:$0xff]
    %v409 = vld [vmem:[%s10] sm:$0xff]
    %v412 = vcombine.high %v406, %v406
    %v413 = vcombine.high %v407, %v407
    %vm414 = vcmask 31744
    %v416 = vsel %vm414, %v409, 0
    %v418 = vsel %vm288, %v406, 0
    %v420 = vsel %vm288, %v412, 0
    %v422 = vsel %vm288, %v407, 0
    %v424 = vsel %vm288, %v413, 0
    %426 = vmatprep.subr.mxu0 %v420
    %427 = vmatpush1.msra.mxu0 %v418
    %428 = vmatprep.subr.mxu0 0.0
    %429 = vmatpush1.msra.mxu0 0.0
    %430 = vmatprep.subr.mxu0 0.0
    %431 = vmatpush1.msra.mxu0 0.0
    %432 = vmatprep.subr.mxu0 0.0
    %433 = vmatpush1.msra.mxu0 0.0
    %434 = vmatprep.subr.mxu0 0.0
    %435 = vmatpush1.msra.mxu0 0.0
    %436 = vmatprep.subr.mxu0 0.0
    %437 = vmatpush1.msra.mxu0 0.0
    %438 = vmatprep.subr.mxu0 0.0
    %439 = vmatpush1.msra.mxu0 0.0
    %440 = vmatprep.subr.mxu0 0.0
    %441 = vmatpush1.msra.mxu0 0.0
    %442 = vmatprep.subr.mxu0 0.0
    %443 = vmatpush1.msra.mxu0 0.0
    %444 = vmatprep.subr.mxu0 0.0
    %445 = vmatpush1.msra.mxu0 0.0
    %446 = vmatprep.subr.mxu0 0.0
    %447 = vmatpush1.msra.mxu0 0.0
    %448 = vmatprep.subr.mxu0 0.0
    %449 = vmatpush1.msra.mxu0 0.0
    %450 = vmatprep.subr.mxu0 0.0
    %451 = vmatpush1.msra.mxu0 0.0
    %452 = vmatprep.subr.mxu0 0.0
    %453 = vmatpush1.msra.mxu0 0.0
    %454 = vmatprep.subr.mxu0 0.0
    %455 = vmatpush1.msra.mxu0 0.0
    %456 = vmatprep.subr.mxu0 0.0
    %457 = vmatpush1.msra.mxu0 0.0
    %458 = vmatprep.subr.mxu0 0.0
    %459 = vmatpush1.msra.mxu0 0.0
    %460 = vmatprep.subr.mxu0 0.0
    %461 = vmatpush1.msra.mxu0 0.0
    %462 = vmatprep.subr.mxu0 0.0
    %463 = vmatpush1.msra.mxu0 0.0
    %464 = vmatprep.subr.mxu0 0.0
    %465 = vmatpush1.msra.mxu0 0.0
    %466 = vmatprep.subr.mxu0 0.0
    %467 = vmatpush1.msra.mxu0 0.0
    %468 = vmatprep.subr.mxu0 0.0
    %469 = vmatpush1.msra.mxu0 0.0
    %470 = vmatprep.subr.mxu0 0.0
    %471 = vmatpush1.msra.mxu0 0.0
    %472 = vmatprep.subr.mxu0 0.0
    %473 = vmatpush1.msra.mxu0 0.0
    %474 = vmatprep.subr.mxu0 0.0
    %475 = vmatpush1.msra.mxu0 0.0
    %476 = vmatprep.subr.mxu0 0.0
    %477 = vmatpush1.msra.mxu0 0.0
    %478 = vmatprep.subr.mxu0 0.0
    %479 = vmatpush1.msra.mxu0 0.0
    %480 = vmatprep.subr.mxu0 0.0
    %481 = vmatpush1.msra.mxu0 0.0
    %482 = vmatprep.subr.mxu0 0.0
    %483 = vmatpush1.msra.mxu0 0.0
    %484 = vmatprep.subr.mxu0 0.0
    %485 = vmatpush1.msra.mxu0 0.0
    %486 = vmatprep.subr.mxu0 0.0
    %487 = vmatpush1.msra.mxu0 0.0
    %488 = vmatprep.subr.mxu0 0.0
    %489 = vmatpush1.msra.mxu0 0.0
    %490 = vmatprep.mubr.f32.mxu0 0.0
    %491 = vmatmul.mubr.f32.gmra.mrb[0].mxu0 %v416
    %v492 = vpop.f32.mrb[0].mxu0
    %v493 = vadd.f32 0.0, %v492
    %v494 = vpop.f32.mrb[0].mxu0
    %v495 = vadd.f32 0.0, %v494
    %496 = vdwg.mxu0
    %497 = vmatprep.subr.mxu0 %v424
    %498 = vmatpush1.msra.mxu0 %v422
    %499 = vmatprep.subr.mxu0 0.0
    %500 = vmatpush1.msra.mxu0 0.0
    %501 = vmatprep.subr.mxu0 0.0
    %502 = vmatpush1.msra.mxu0 0.0
    %503 = vmatprep.subr.mxu0 0.0
    %504 = vmatpush1.msra.mxu0 0.0
    %505 = vmatprep.subr.mxu0 0.0
    %506 = vmatpush1.msra.mxu0 0.0
    %507 = vmatprep.subr.mxu0 0.0
    %508 = vmatpush1.msra.mxu0 0.0
    %509 = vmatprep.subr.mxu0 0.0
    %510 = vmatpush1.msra.mxu0 0.0
    %511 = vmatprep.subr.mxu0 0.0
    %512 = vmatpush1.msra.mxu0 0.0
    %513 = vmatprep.subr.mxu0 0.0
    %514 = vmatpush1.msra.mxu0 0.0
    %515 = vmatprep.subr.mxu0 0.0
    %516 = vmatpush1.msra.mxu0 0.0
    %517 = vmatprep.subr.mxu0 0.0
    %518 = vmatpush1.msra.mxu0 0.0
    %519 = vmatprep.subr.mxu0 0.0
    %520 = vmatpush1.msra.mxu0 0.0
    %521 = vmatprep.subr.mxu0 0.0
    %522 = vmatpush1.msra.mxu0 0.0
    %523 = vmatprep.subr.mxu0 0.0
    %524 = vmatpush1.msra.mxu0 0.0
    %525 = vmatprep.subr.mxu0 0.0
    %526 = vmatpush1.msra.mxu0 0.0
    %527 = vmatprep.subr.mxu0 0.0
    %528 = vmatpush1.msra.mxu0 0.0
    %529 = vmatprep.subr.mxu0 0.0
    %530 = vmatpush1.msra.mxu0 0.0
    %531 = vmatprep.subr.mxu0 0.0
    %532 = vmatpush1.msra.mxu0 0.0
    %533 = vmatprep.subr.mxu0 0.0
    %534 = vmatpush1.msra.mxu0 0.0
    %535 = vmatprep.subr.mxu0 0.0
    %536 = vmatpush1.msra.mxu0 0.0
    %537 = vmatprep.subr.mxu0 0.0
    %538 = vmatpush1.msra.mxu0 0.0
    %539 = vmatprep.subr.mxu0 0.0
    %540 = vmatpush1.msra.mxu0 0.0
    %541 = vmatprep.subr.mxu0 0.0
    %542 = vmatpush1.msra.mxu0 0.0
    %543 = vmatprep.subr.mxu0 0.0
    %544 = vmatpush1.msra.mxu0 0.0
    %545 = vmatprep.subr.mxu0 0.0
    %546 = vmatpush1.msra.mxu0 0.0
    %547 = vmatprep.subr.mxu0 0.0
    %548 = vmatpush1.msra.mxu0 0.0
    %549 = vmatprep.subr.mxu0 0.0
    %550 = vmatpush1.msra.mxu0 0.0
    %551 = vmatprep.subr.mxu0 0.0
    %552 = vmatpush1.msra.mxu0 0.0
    %553 = vmatprep.subr.mxu0 0.0
    %554 = vmatpush1.msra.mxu0 0.0
    %555 = vmatprep.subr.mxu0 0.0
    %556 = vmatpush1.msra.mxu0 0.0
    %557 = vmatprep.subr.mxu0 0.0
    %558 = vmatpush1.msra.mxu0 0.0
    %559 = vmatprep.subr.mxu0 0.0
    %560 = vmatpush1.msra.mxu0 0.0
    %561 = vmatprep.mubr.f32.mxu0 0.0
    %562 = vmatmul.mubr.f32.gmra.mrb[0].mxu0 %v416
    %v563 = vpop.f32.mrb[0].mxu0
    %v564 = vadd.f32 0.0, %v563
    %v565 = vpop.f32.mrb[0].mxu0
    %v566 = vadd.f32 0.0, %v565
    %567 = vdwg.mxu0
    %v569 = vsel %vm414, %v408, 0
    %v571 = vsel %vm288, %v295, 0
    %v573 = vsel %vm288, %v299, 0
    %v575 = vsel %vm288, %v296, 0
    %v577 = vsel %vm288, %v300, 0
    %579 = vmatprep.subr.mxu0 %v573
    %580 = vmatpush1.msra.mxu0 %v571
    %581 = vmatprep.subr.mxu0 0.0
    %582 = vmatpush1.msra.mxu0 0.0
    %583 = vmatprep.subr.mxu0 0.0
    %584 = vmatpush1.msra.mxu0 0.0
    %585 = vmatprep.subr.mxu0 0.0
    %586 = vmatpush1.msra.mxu0 0.0
    %587 = vmatprep.subr.mxu0 0.0
    %588 = vmatpush1.msra.mxu0 0.0
    %589 = vmatprep.subr.mxu0 0.0
    %590 = vmatpush1.msra.mxu0 0.0
    %591 = vmatprep.subr.mxu0 0.0
    %592 = vmatpush1.msra.mxu0 0.0
    %593 = vmatprep.subr.mxu0 0.0
    %594 = vmatpush1.msra.mxu0 0.0
    %595 = vmatprep.subr.mxu0 0.0
    %596 = vmatpush1.msra.mxu0 0.0
    %597 = vmatprep.subr.mxu0 0.0
    %598 = vmatpush1.msra.mxu0 0.0
    %599 = vmatprep.subr.mxu0 0.0
    %600 = vmatpush1.msra.mxu0 0.0
    %601 = vmatprep.subr.mxu0 0.0
    %602 = vmatpush1.msra.mxu0 0.0
    %603 = vmatprep.subr.mxu0 0.0
    %604 = vmatpush1.msra.mxu0 0.0
    %605 = vmatprep.subr.mxu0 0.0
    %606 = vmatpush1.msra.mxu0 0.0
    %607 = vmatprep.subr.mxu0 0.0
    %608 = vmatpush1.msra.mxu0 0.0
    %609 = vmatprep.subr.mxu0 0.0
    %610 = vmatpush1.msra.mxu0 0.0
    %611 = vmatprep.subr.mxu0 0.0
    %612 = vmatpush1.msra.mxu0 0.0
    %613 = vmatprep.subr.mxu0 0.0
    %614 = vmatpush1.msra.mxu0 0.0
    %615 = vmatprep.subr.mxu0 0.0
    %616 = vmatpush1.msra.mxu0 0.0
    %617 = vmatprep.subr.mxu0 0.0
    %618 = vmatpush1.msra.mxu0 0.0
    %619 = vmatprep.subr.mxu0 0.0
    %620 = vmatpush1.msra.mxu0 0.0
    %621 = vmatprep.subr.mxu0 0.0
    %622 = vmatpush1.msra.mxu0 0.0
    %623 = vmatprep.subr.mxu0 0.0
    %624 = vmatpush1.msra.mxu0 0.0
    %625 = vmatprep.subr.mxu0 0.0
    %626 = vmatpush1.msra.mxu0 0.0
    %627 = vmatprep.subr.mxu0 0.0
    %628 = vmatpush1.msra.mxu0 0.0
    %629 = vmatprep.subr.mxu0 0.0
    %630 = vmatpush1.msra.mxu0 0.0
    %631 = vmatprep.subr.mxu0 0.0
    %632 = vmatpush1.msra.mxu0 0.0
    %633 = vmatprep.subr.mxu0 0.0
    %634 = vmatpush1.msra.mxu0 0.0
    %635 = vmatprep.subr.mxu0 0.0
    %636 = vmatpush1.msra.mxu0 0.0
    %637 = vmatprep.subr.mxu0 0.0
    %638 = vmatpush1.msra.mxu0 0.0
    %639 = vmatprep.subr.mxu0 0.0
    %640 = vmatpush1.msra.mxu0 0.0
    %641 = vmatprep.subr.mxu0 0.0
    %642 = vmatpush1.msra.mxu0 0.0
    %643 = vmatprep.mubr.f32.mxu0 0.0
    %644 = vmatmul.mubr.f32.gmra.mrb[0].mxu0 %v569
    %v645 = vpop.f32.mrb[0].mxu0
    %v646 = vadd.f32 %v493, %v645
    %v647 = vpop.f32.mrb[0].mxu0
    %v648 = vadd.f32 %v495, %v647
    %649 = vdwg.mxu0
    %650 = vmatprep.subr.mxu0 %v577
    %651 = vmatpush1.msra.mxu0 %v575
    %652 = vmatprep.subr.mxu0 0.0
    %653 = vmatpush1.msra.mxu0 0.0
    %654 = vmatprep.subr.mxu0 0.0
    %655 = vmatpush1.msra.mxu0 0.0
    %656 = vmatprep.subr.mxu0 0.0
    %657 = vmatpush1.msra.mxu0 0.0
    %658 = vmatprep.subr.mxu0 0.0
    %659 = vmatpush1.msra.mxu0 0.0
    %660 = vmatprep.subr.mxu0 0.0
    %661 = vmatpush1.msra.mxu0 0.0
    %662 = vmatprep.subr.mxu0 0.0
    %663 = vmatpush1.msra.mxu0 0.0
    %664 = vmatprep.subr.mxu0 0.0
    %665 = vmatpush1.msra.mxu0 0.0
    %666 = vmatprep.subr.mxu0 0.0
    %667 = vmatpush1.msra.mxu0 0.0
    %668 = vmatprep.subr.mxu0 0.0
    %669 = vmatpush1.msra.mxu0 0.0
    %670 = vmatprep.subr.mxu0 0.0
    %671 = vmatpush1.msra.mxu0 0.0
    %672 = vmatprep.subr.mxu0 0.0
    %673 = vmatpush1.msra.mxu0 0.0
    %674 = vmatprep.subr.mxu0 0.0
    %675 = vmatpush1.msra.mxu0 0.0
    %676 = vmatprep.subr.mxu0 0.0
    %677 = vmatpush1.msra.mxu0 0.0
    %678 = vmatprep.subr.mxu0 0.0
    %679 = vmatpush1.msra.mxu0 0.0
    %680 = vmatprep.subr.mxu0 0.0
    %681 = vmatpush1.msra.mxu0 0.0
    %682 = vmatprep.subr.mxu0 0.0
    %683 = vmatpush1.msra.mxu0 0.0
    %684 = vmatprep.subr.mxu0 0.0
    %685 = vmatpush1.msra.mxu0 0.0
    %686 = vmatprep.subr.mxu0 0.0
    %687 = vmatpush1.msra.mxu0 0.0
    %688 = vmatprep.subr.mxu0 0.0
    %689 = vmatpush1.msra.mxu0 0.0
    %690 = vmatprep.subr.mxu0 0.0
    %691 = vmatpush1.msra.mxu0 0.0
    %692 = vmatprep.subr.mxu0 0.0
    %693 = vmatpush1.msra.mxu0 0.0
    %694 = vmatprep.subr.mxu0 0.0
    %695 = vmatpush1.msra.mxu0 0.0
    %696 = vmatprep.subr.mxu0 0.0
    %697 = vmatpush1.msra.mxu0 0.0
    %698 = vmatprep.subr.mxu0 0.0
    %699 = vmatpush1.msra.mxu0 0.0
    %700 = vmatprep.subr.mxu0 0.0
    %701 = vmatpush1.msra.mxu0 0.0
    %702 = vmatprep.subr.mxu0 0.0
    %703 = vmatpush1.msra.mxu0 0.0
    %704 = vmatprep.subr.mxu0 0.0
    %705 = vmatpush1.msra.mxu0 0.0
    %706 = vmatprep.subr.mxu0 0.0
    %707 = vmatpush1.msra.mxu0 0.0
    %708 = vmatprep.subr.mxu0 0.0
    %709 = vmatpush1.msra.mxu0 0.0
    %710 = vmatprep.subr.mxu0 0.0
    %711 = vmatpush1.msra.mxu0 0.0
    %712 = vmatprep.subr.mxu0 0.0
    %713 = vmatpush1.msra.mxu0 0.0
    %714 = vmatprep.mubr.f32.mxu0 0.0
    %715 = vmatmul.mubr.f32.gmra.mrb[0].mxu0 %v569
    %v716 = vpop.f32.mrb[0].mxu0
    %v717 = vadd.f32 %v564, %v716
    %v718 = vpop.f32.mrb[0].mxu0
    %v719 = vadd.f32 %v566, %v718
    %720 = vdwg.mxu0
    %721 = vst [vmem:[#allocation3] sm:$0xff] 0.0
    %722 = vst [vmem:[#allocation3 + $0x28] sm:$0xff] 0.0
    %723 = vst [vmem:[#allocation3] sm:$0xf0] 0.0
    %724 = vst [vmem:[#allocation3 + $0x8] sm:$0xf0] 0.0
    %725 = vst [vmem:[#allocation3 + $0x10] sm:$0xf0] 0.0
    %726 = vst [vmem:[#allocation3 + $0x18] sm:$0xf0] 0.0
    %727 = vst [vmem:[#allocation3 + $0x20] sm:$0xf0] 0.0
    %728 = vst [vmem:[#allocation3 + $0x28] sm:$0xf0] 0.0
    %v729 = vmax.f32 %v406, 0.0
    %v730 = vmax.f32 %v407, 0.0
    %v731 = vmul.f32 %v729, %v341
    %v732 = vmul.f32 %v730, %v342
    %v735 = vcombine.high %v731, %v731
    %v736 = vcombine.high %v732, %v732
    %739 = vst [vmem:[#allocation3 + $0x8] sm:$0xf] %v731
    %740 = vst [vmem:[#allocation3 + $0x10] sm:$0xf] %v735
    %741 = vst [vmem:[#allocation3 + $0x18] sm:$0xf] %v732
    %742 = vst [vmem:[#allocation3 + $0x20] sm:$0xf] %v736
    %v743 = vld [vmem:[#allocation3] sm:$0xff]
    %v744 = vld [vmem:[#allocation3 + $0x8] sm:$0xff]
    %v745 = vld [vmem:[#allocation3 + $0x10] sm:$0xff]
    %v746 = vld [vmem:[#allocation3 + $0x18] sm:$0xff]
    %v747 = vld [vmem:[#allocation3 + $0x20] sm:$0xff]
    %753 = vrot.lane.b32.xlu0 %v743, 15
    %v754 = vpop.permute.xlu0 %753
    %755 = vrot.lane.b32.xlu0 %v744, 15
    %v756 = vpop.permute.xlu0 %755
    %757 = vrot.lane.b32.xlu0 %v745, 15
    %v758 = vpop.permute.xlu0 %757
    %759 = vrot.lane.b32.xlu0 %v746, 15
    %v760 = vpop.permute.xlu0 %759
    %761 = vrot.lane.b32.xlu0 %v747, 15
    %v762 = vpop.permute.xlu0 %761
    %vm763 = vcmask 121856
    %v764 = vsel %vm763, %v754, %v756
    %v765 = vsel %vm763, %v756, %v758
    %v766 = vsel %vm763, %v758, %v760
    %v767 = vsel %vm763, %v760, %v762
    %772 = vst [vmem:[#allocation5] sm:$0xff] %v764
    %773 = vst [vmem:[#allocation5 + $0x8] sm:$0xff] %v765
    %774 = vst [vmem:[#allocation5 + $0x10] sm:$0xff] %v766
    %775 = vst [vmem:[#allocation5 + $0x18] sm:$0xff] %v767
    %v776 = vld [vmem:[#allocation3] sm:$0xff]
    %v777 = vld [vmem:[#allocation3 + $0x8] sm:$0xff]
    %v778 = vld [vmem:[#allocation3 + $0x10] sm:$0xff]
    %v779 = vld [vmem:[#allocation3 + $0x18] sm:$0xff]
    %v780 = vld [vmem:[#allocation3 + $0x20] sm:$0xff]
    %786 = vrot.lane.b32.xlu0 %v776, 14
    %v787 = vpop.permute.xlu0 %786
    %788 = vrot.lane.b32.xlu0 %v777, 14
    %v789 = vpop.permute.xlu0 %788
    %790 = vrot.lane.b32.xlu0 %v778, 14
    %v791 = vpop.permute.xlu0 %790
    %792 = vrot.lane.b32.xlu0 %v779, 14
    %v793 = vpop.permute.xlu0 %792
    %794 = vrot.lane.b32.xlu0 %v780, 14
    %v795 = vpop.permute.xlu0 %794
    %vm796 = vcmask 113664
    %v797 = vsel %vm796, %v787, %v789
    %v798 = vsel %vm796, %v789, %v791
    %v799 = vsel %vm796, %v791, %v793
    %v800 = vsel %vm796, %v793, %v795
    %805 = vst [vmem:[#allocation5 + $0x20] sm:$0xff] %v797
    %806 = vst [vmem:[#allocation5 + $0x28] sm:$0xff] %v798
    %807 = vst [vmem:[#allocation5 + $0x30] sm:$0xff] %v799
    %808 = vst [vmem:[#allocation5 + $0x38] sm:$0xff] %v800
    %v809 = vld [vmem:[#allocation3] sm:$0xff]
    %v810 = vld [vmem:[#allocation3 + $0x8] sm:$0xff]
    %v811 = vld [vmem:[#allocation3 + $0x10] sm:$0xff]
    %v812 = vld [vmem:[#allocation3 + $0x18] sm:$0xff]
    %v813 = vld [vmem:[#allocation3 + $0x20] sm:$0xff]
    %819 = vrot.lane.b32.xlu0 %v809, 13
    %v820 = vpop.permute.xlu0 %819
    %821 = vrot.lane.b32.xlu0 %v810, 13
    %v822 = vpop.permute.xlu0 %821
    %823 = vrot.lane.b32.xlu0 %v811, 13
    %v824 = vpop.permute.xlu0 %823
    %825 = vrot.lane.b32.xlu0 %v812, 13
    %v826 = vpop.permute.xlu0 %825
    %827 = vrot.lane.b32.xlu0 %v813, 13
    %v828 = vpop.permute.xlu0 %827
    %vm829 = vcmask 105472
    %v830 = vsel %vm829, %v820, %v822
    %v831 = vsel %vm829, %v822, %v824
    %v832 = vsel %vm829, %v824, %v826
    %v833 = vsel %vm829, %v826, %v828
    %838 = vst [vmem:[#allocation5 + $0x40] sm:$0xff] %v830
    %839 = vst [vmem:[#allocation5 + $0x48] sm:$0xff] %v831
    %840 = vst [vmem:[#allocation5 + $0x50] sm:$0xff] %v832
    %841 = vst [vmem:[#allocation5 + $0x58] sm:$0xff] %v833
    %v842 = vld [vmem:[#allocation3] sm:$0xff]
    %v843 = vld [vmem:[#allocation3 + $0x8] sm:$0xff]
    %v844 = vld [vmem:[#allocation3 + $0x10] sm:$0xff]
    %v845 = vld [vmem:[#allocation3 + $0x18] sm:$0xff]
    %v846 = vld [vmem:[#allocation3 + $0x20] sm:$0xff]
    %852 = vrot.lane.b32.xlu0 %v842, 1
    %v853 = vpop.permute.xlu0 %852
    %854 = vrot.lane.b32.xlu0 %v843, 1
    %v855 = vpop.permute.xlu0 %854
    %856 = vrot.lane.b32.xlu0 %v844, 1
    %v857 = vpop.permute.xlu0 %856
    %858 = vrot.lane.b32.xlu0 %v845, 1
    %v859 = vpop.permute.xlu0 %858
    %860 = vrot.lane.b32.xlu0 %v846, 1
    %v861 = vpop.permute.xlu0 %860
    %vm862 = vcmask 7168
    %v863 = vsel %vm862, %v853, %v855
    %v864 = vsel %vm862, %v855, %v857
    %v865 = vsel %vm862, %v857, %v859
    %v866 = vsel %vm862, %v859, %v861
    %871 = vst [vmem:[#allocation5 + $0x60] sm:$0xff] %v863
    %872 = vst [vmem:[#allocation5 + $0x68] sm:$0xff] %v864
    %873 = vst [vmem:[#allocation5 + $0x70] sm:$0xff] %v865
    %874 = vst [vmem:[#allocation5 + $0x78] sm:$0xff] %v866
    %v875 = vld [vmem:[#allocation3 + $0x8] sm:$0xff]
    %v876 = vld [vmem:[#allocation3 + $0x10] sm:$0xff]
    %v877 = vld [vmem:[#allocation3 + $0x18] sm:$0xff]
    %v878 = vld [vmem:[#allocation3 + $0x20] sm:$0xff]
    %879 = vst [vmem:[#allocation5 + $0x80] sm:$0xff] %v875
    %880 = vst [vmem:[#allocation5 + $0x88] sm:$0xff] %v876
    %881 = vst [vmem:[#allocation5 + $0x90] sm:$0xff] %v877
    %882 = vst [vmem:[#allocation5 + $0x98] sm:$0xff] %v878
    %v883 = vld [vmem:[#allocation3 + $0x8] sm:$0xff]
    %v884 = vld [vmem:[#allocation3 + $0x10] sm:$0xff]
    %v885 = vld [vmem:[#allocation3 + $0x18] sm:$0xff]
    %v886 = vld [vmem:[#allocation3 + $0x20] sm:$0xff]
    %v887 = vld [vmem:[#allocation3 + $0x28] sm:$0xff]
    %893 = vrot.lane.b32.xlu0 %v883, 127
    %v894 = vpop.permute.xlu0 %893
    %895 = vrot.lane.b32.xlu0 %v884, 127
    %v896 = vpop.permute.xlu0 %895
    %897 = vrot.lane.b32.xlu0 %v885, 127
    %v898 = vpop.permute.xlu0 %897
    %899 = vrot.lane.b32.xlu0 %v886, 127
    %v900 = vpop.permute.xlu0 %899
    %901 = vrot.lane.b32.xlu0 %v887, 127
    %v902 = vpop.permute.xlu0 %901
    %vm903 = vcmask 1039360
    %v904 = vsel %vm903, %v894, %v896
    %v905 = vsel %vm903, %v896, %v898
    %v906 = vsel %vm903, %v898, %v900
    %v907 = vsel %vm903, %v900, %v902
    %912 = vst [vmem:[#allocation5 + $0xa0] sm:$0xff] %v904
    %913 = vst [vmem:[#allocation5 + $0xa8] sm:$0xff] %v905
    %914 = vst [vmem:[#allocation5 + $0xb0] sm:$0xff] %v906
    %915 = vst [vmem:[#allocation5 + $0xb8] sm:$0xff] %v907
    %v916 = vld [vmem:[#allocation3 + $0x8] sm:$0xff]
    %v917 = vld [vmem:[#allocation3 + $0x10] sm:$0xff]
    %v918 = vld [vmem:[#allocation3 + $0x18] sm:$0xff]
    %v919 = vld [vmem:[#allocation3 + $0x20] sm:$0xff]
    %v920 = vld [vmem:[#allocation3 + $0x28] sm:$0xff]
    %926 = vrot.lane.b32.xlu0 %v916, 115
    %v927 = vpop.permute.xlu0 %926
    %928 = vrot.lane.b32.xlu0 %v917, 115
    %v929 = vpop.permute.xlu0 %928
    %930 = vrot.lane.b32.xlu0 %v918, 115
    %v931 = vpop.permute.xlu0 %930
    %932 = vrot.lane.b32.xlu0 %v919, 115
    %v933 = vpop.permute.xlu0 %932
    %934 = vrot.lane.b32.xlu0 %v920, 115
    %v935 = vpop.permute.xlu0 %934
    %vm936 = vcmask 941056
    %v937 = vsel %vm936, %v927, %v929
    %v938 = vsel %vm936, %v929, %v931
    %v939 = vsel %vm936, %v931, %v933
    %v940 = vsel %vm936, %v933, %v935
    %945 = vst [vmem:[#allocation5 + $0xc0] sm:$0xff] %v937
    %946 = vst [vmem:[#allocation5 + $0xc8] sm:$0xff] %v938
    %947 = vst [vmem:[#allocation5 + $0xd0] sm:$0xff] %v939
    %948 = vst [vmem:[#allocation5 + $0xd8] sm:$0xff] %v940
    %v949 = vld [vmem:[#allocation3 + $0x8] sm:$0xff]
    %v950 = vld [vmem:[#allocation3 + $0x10] sm:$0xff]
    %v951 = vld [vmem:[#allocation3 + $0x18] sm:$0xff]
    %v952 = vld [vmem:[#allocation3 + $0x20] sm:$0xff]
    %v953 = vld [vmem:[#allocation3 + $0x28] sm:$0xff]
    %959 = vrot.lane.b32.xlu0 %v949, 114
    %v960 = vpop.permute.xlu0 %959
    %961 = vrot.lane.b32.xlu0 %v950, 114
    %v962 = vpop.permute.xlu0 %961
    %963 = vrot.lane.b32.xlu0 %v951, 114
    %v964 = vpop.permute.xlu0 %963
    %965 = vrot.lane.b32.xlu0 %v952, 114
    %v966 = vpop.permute.xlu0 %965
    %967 = vrot.lane.b32.xlu0 %v953, 114
    %v968 = vpop.permute.xlu0 %967
    %vm969 = vcmask 932864
    %v970 = vsel %vm969, %v960, %v962
    %v971 = vsel %vm969, %v962, %v964
    %v972 = vsel %vm969, %v964, %v966
    %v973 = vsel %vm969, %v966, %v968
    %978 = vst [vmem:[#allocation5 + $0xe0] sm:$0xff] %v970
    %979 = vst [vmem:[#allocation5 + $0xe8] sm:$0xff] %v971
    %980 = vst [vmem:[#allocation5 + $0xf0] sm:$0xff] %v972
    %981 = vst [vmem:[#allocation5 + $0xf8] sm:$0xff] %v973
    %v982 = vld [vmem:[#allocation3 + $0x8] sm:$0xff]
    %v983 = vld [vmem:[#allocation3 + $0x10] sm:$0xff]
    %v984 = vld [vmem:[#allocation3 + $0x18] sm:$0xff]
    %v985 = vld [vmem:[#allocation3 + $0x20] sm:$0xff]
    %v986 = vld [vmem:[#allocation3 + $0x28] sm:$0xff]
    %992 = vrot.lane.b32.xlu0 %v982, 113
    %v993 = vpop.permute.xlu0 %992
    %994 = vrot.lane.b32.xlu0 %v983, 113
    %v995 = vpop.permute.xlu0 %994
    %996 = vrot.lane.b32.xlu0 %v984, 113
    %v997 = vpop.permute.xlu0 %996
    %998 = vrot.lane.b32.xlu0 %v985, 113
    %v999 = vpop.permute.xlu0 %998
    %1000 = vrot.lane.b32.xlu0 %v986, 113
    %v1001 = vpop.permute.xlu0 %1000
    %vm1002 = vcmask 924672
    %v1003 = vsel %vm1002, %v993, %v995
    %v1004 = vsel %vm1002, %v995, %v997
    %v1005 = vsel %vm1002, %v997, %v999
    %v1006 = vsel %vm1002, %v999, %v1001
    %1011 = vst [vmem:[#allocation5 + $0x100] sm:$0xff] %v1003
    %1012 = vst [vmem:[#allocation5 + $0x108] sm:$0xff] %v1004
    %1013 = vst [vmem:[#allocation5 + $0x110] sm:$0xff] %v1005
    %1014 = vst [vmem:[#allocation5 + $0x118] sm:$0xff] %v1006
    %v1015 = vld [vmem:[%s7] sm:$0xf]
    %v1016 = vld [vmem:[#allocation5] sm:$0xff]
    %v1017 = vld [vmem:[#allocation5 + $0x8] sm:$0xff]
    %v1018 = vld [vmem:[#allocation5 + $0x10] sm:$0xff]
    %v1019 = vld [vmem:[#allocation5 + $0x18] sm:$0xff]
    %v1020 = vld [vmem:[#allocation5 + $0x20] sm:$0xff]
    %v1021 = vld [vmem:[#allocation5 + $0x28] sm:$0xff]
    %v1022 = vld [vmem:[#allocation5 + $0x30] sm:$0xff]
    %v1023 = vld [vmem:[#allocation5 + $0x38] sm:$0xff]
    %v1024 = vld [vmem:[#allocation5 + $0x40] sm:$0xff]
    %v1025 = vld [vmem:[#allocation5 + $0x48] sm:$0xff]
    %v1026 = vld [vmem:[#allocation5 + $0x50] sm:$0xff]
    %v1027 = vld [vmem:[#allocation5 + $0x58] sm:$0xff]
    %v1028 = vld [vmem:[#allocation5 + $0x60] sm:$0xff]
    %v1029 = vld [vmem:[#allocation5 + $0x68] sm:$0xff]
    %v1030 = vld [vmem:[#allocation5 + $0x70] sm:$0xff]
    %v1031 = vld [vmem:[#allocation5 + $0x78] sm:$0xff]
    %v1032 = vld [vmem:[#allocation5 + $0x80] sm:$0xff]
    %v1033 = vld [vmem:[#allocation5 + $0x88] sm:$0xff]
    %v1034 = vld [vmem:[#allocation5 + $0x90] sm:$0xff]
    %v1035 = vld [vmem:[#allocation5 + $0x98] sm:$0xff]
    %v1036 = vld [vmem:[#allocation5 + $0xa0] sm:$0xff]
    %v1037 = vld [vmem:[#allocation5 + $0xa8] sm:$0xff]
    %v1038 = vld [vmem:[#allocation5 + $0xb0] sm:$0xff]
    %v1039 = vld [vmem:[#allocation5 + $0xb8] sm:$0xff]
    %v1040 = vld [vmem:[#allocation5 + $0xc0] sm:$0xff]
    %v1041 = vld [vmem:[#allocation5 + $0xc8] sm:$0xff]
    %v1042 = vld [vmem:[#allocation5 + $0xd0] sm:$0xff]
    %v1043 = vld [vmem:[#allocation5 + $0xd8] sm:$0xff]
    %v1044 = vld [vmem:[#allocation5 + $0xe0] sm:$0xff]
    %v1045 = vld [vmem:[#allocation5 + $0xe8] sm:$0xff]
    %v1046 = vld [vmem:[#allocation5 + $0xf0] sm:$0xff]
    %v1047 = vld [vmem:[#allocation5 + $0xf8] sm:$0xff]
    %v1048 = vld [vmem:[#allocation5 + $0x100] sm:$0xff]
    %v1049 = vld [vmem:[#allocation5 + $0x108] sm:$0xff]
    %v1050 = vld [vmem:[#allocation5 + $0x110] sm:$0xff]
    %v1051 = vld [vmem:[#allocation5 + $0x118] sm:$0xff]
    %v1052 = vpack.c.bf16 %v1020, %v1016
    %v1053 = vpack.c.bf16 %v1021, %v1017
    %v1054 = vpack.c.bf16 %v1022, %v1018
    %v1055 = vpack.c.bf16 %v1023, %v1019
    %v1056 = vpack.c.bf16 %v1028, %v1024
    %v1057 = vpack.c.bf16 %v1029, %v1025
    %v1058 = vpack.c.bf16 %v1030, %v1026
    %v1059 = vpack.c.bf16 %v1031, %v1027
    %v1060 = vpack.c.bf16 %v1036, %v1032
    %v1061 = vpack.c.bf16 %v1037, %v1033
    %v1062 = vpack.c.bf16 %v1038, %v1034
    %v1063 = vpack.c.bf16 %v1039, %v1035
    %v1064 = vpack.c.bf16 %v1044, %v1040
    %v1065 = vpack.c.bf16 %v1045, %v1041
    %v1066 = vpack.c.bf16 %v1046, %v1042
    %v1067 = vpack.c.bf16 %v1047, %v1043
    %v1068 = vpack.c.bf16 %v1048, %v1048
    %v1069 = vpack.c.bf16 %v1049, %v1049
    %v1070 = vpack.c.bf16 %v1050, %v1050
    %v1071 = vpack.c.bf16 %v1051, %v1051
    %vm1072 = vcmask 588800
    %v1074 = vsel %vm1072, %v1015, 0
    %v1077 = vsel %vm288, %v1068, 0
    %v1080 = vsel %vm288, %v1069, 0
    %v1083 = vsel %vm288, %v1070, 0
    %v1086 = vsel %vm288, %v1071, 0
    %1088 = vmatprep.subr.bf16.mxu0 %v1053
    %1089 = vmatpush1.bf16.msra.mxu0 %v1052
    %1090 = vmatprep.subr.bf16.mxu0 %v1057
    %1091 = vmatpush1.bf16.msra.mxu0 %v1056
    %1092 = vmatprep.subr.bf16.mxu0 %v1061
    %1093 = vmatpush1.bf16.msra.mxu0 %v1060
    %1094 = vmatprep.subr.bf16.mxu0 %v1065
    %1095 = vmatpush1.bf16.msra.mxu0 %v1064
    %1096 = vmatprep.subr.bf16.mxu0 %v1080
    %1097 = vmatpush1.bf16.msra.mxu0 %v1077
    %1098 = vmatprep.subr.bf16.mxu0 0
    %1099 = vmatpush1.bf16.msra.mxu0 0
    %1100 = vmatprep.subr.bf16.mxu0 0
    %1101 = vmatpush1.bf16.msra.mxu0 0
    %1102 = vmatprep.subr.bf16.mxu0 0
    %1103 = vmatpush1.bf16.msra.mxu0 0
    %1104 = vmatprep.subr.bf16.mxu0 0
    %1105 = vmatpush1.bf16.msra.mxu0 0
    %1106 = vmatprep.subr.bf16.mxu0 0
    %1107 = vmatpush1.bf16.msra.mxu0 0
    %1108 = vmatprep.subr.bf16.mxu0 0
    %1109 = vmatpush1.bf16.msra.mxu0 0
    %1110 = vmatprep.subr.bf16.mxu0 0
    %1111 = vmatpush1.bf16.msra.mxu0 0
    %1112 = vmatprep.subr.bf16.mxu0 0
    %1113 = vmatpush1.bf16.msra.mxu0 0
    %1114 = vmatprep.subr.bf16.mxu0 0
    %1115 = vmatpush1.bf16.msra.mxu0 0
    %1116 = vmatprep.subr.bf16.mxu0 0
    %1117 = vmatpush1.bf16.msra.mxu0 0
    %1118 = vmatprep.subr.bf16.mxu0 0
    %1119 = vmatpush1.bf16.msra.mxu0 0
    %1120 = vmatprep.mubr.bf16.mxu0 0
    %1121 = vmatmul.mubr.bf16.gmra.mrb[0].mxu0 %v1074
    %v1122 = vpop.f32.mrb[0].mxu0
    %v1123 = vadd.f32 0.0, %v1122
    %v1124 = vpop.f32.mrb[0].mxu0
    %v1125 = vadd.f32 0.0, %v1124
    %v1126 = vpop.f32.mrb[0].mxu0
    %v1127 = vpop.f32.mrb[0].mxu0
    %1128 = vdwg.mxu0
    %1129 = vmatprep.subr.bf16.mxu0 %v1055
    %1130 = vmatpush1.bf16.msra.mxu0 %v1054
    %1131 = vmatprep.subr.bf16.mxu0 %v1059
    %1132 = vmatpush1.bf16.msra.mxu0 %v1058
    %1133 = vmatprep.subr.bf16.mxu0 %v1063
    %1134 = vmatpush1.bf16.msra.mxu0 %v1062
    %1135 = vmatprep.subr.bf16.mxu0 %v1067
    %1136 = vmatpush1.bf16.msra.mxu0 %v1066
    %1137 = vmatprep.subr.bf16.mxu0 %v1086
    %1138 = vmatpush1.bf16.msra.mxu0 %v1083
    %1139 = vmatprep.subr.bf16.mxu0 0
    %1140 = vmatpush1.bf16.msra.mxu0 0
    %1141 = vmatprep.subr.bf16.mxu0 0
    %1142 = vmatpush1.bf16.msra.mxu0 0
    %1143 = vmatprep.subr.bf16.mxu0 0
    %1144 = vmatpush1.bf16.msra.mxu0 0
    %1145 = vmatprep.subr.bf16.mxu0 0
    %1146 = vmatpush1.bf16.msra.mxu0 0
    %1147 = vmatprep.subr.bf16.mxu0 0
    %1148 = vmatpush1.bf16.msra.mxu0 0
    %1149 = vmatprep.subr.bf16.mxu0 0
    %1150 = vmatpush1.bf16.msra.mxu0 0
    %1151 = vmatprep.subr.bf16.mxu0 0
    %1152 = vmatpush1.bf16.msra.mxu0 0
    %1153 = vmatprep.subr.bf16.mxu0 0
    %1154 = vmatpush1.bf16.msra.mxu0 0
    %1155 = vmatprep.subr.bf16.mxu0 0
    %1156 = vmatpush1.bf16.msra.mxu0 0
    %1157 = vmatprep.subr.bf16.mxu0 0
    %1158 = vmatpush1.bf16.msra.mxu0 0
    %1159 = vmatprep.subr.bf16.mxu0 0
    %1160 = vmatpush1.bf16.msra.mxu0 0
    %1161 = vmatprep.mubr.bf16.mxu0 0
    %1162 = vmatmul.mubr.bf16.gmra.mrb[0].mxu0 %v1074
    %v1163 = vpop.f32.mrb[0].mxu0
    %v1164 = vadd.f32 0.0, %v1163
    %v1165 = vpop.f32.mrb[0].mxu0
    %v1166 = vadd.f32 0.0, %v1165
    %v1167 = vpop.f32.mrb[0].mxu0
    %v1168 = vpop.f32.mrb[0].mxu0
    %1169 = vdwg.mxu0
    %v1174 = vmul.f32 %v1123, %v328
    %v1175 = vmul.f32 %v1125, %v332
    %v1176 = vmul.f32 %v1164, %v336
    %v1177 = vmul.f32 %v1166, %v340
    %v1178 = vadd.f32 %v1174, %v1175
    %v1179 = vadd.f32 %v1178, %v1176
    %v1180 = vadd.f32 %v1179, %v1177
    %1181 = vadd.xlane.f32.xlu0 %v1180
    %v1182 = vpop.xlane.xlu0 %1181
    %v1183 = vmul.f32 %v1182, 0.0034722222
    %v1184 = vsub.f32 %v1123, %v1183
    %v1185 = vsub.f32 %v1125, %v1183
    %v1186 = vsub.f32 %v1164, %v1183
    %v1187 = vsub.f32 %v1166, %v1183
    %v1188 = vmul.f32 %v1184, %v328
    %v1189 = vmul.f32 %v1185, %v332
    %v1190 = vmul.f32 %v1186, %v336
    %v1191 = vmul.f32 %v1187, %v340
    %v1192 = vmul.f32 %v1188, %v1188
    %v1193 = vmul.f32 %v1189, %v1189
    %v1194 = vmul.f32 %v1190, %v1190
    %v1195 = vmul.f32 %v1191, %v1191
    %v1196 = vadd.f32 %v1192, %v1193
    %v1197 = vadd.f32 %v1196, %v1194
    %v1198 = vadd.f32 %v1197, %v1195
    %1199 = vadd.xlane.f32.xlu0 %v1198
    %v1200 = vpop.xlane.xlu0 %1199
    %v1201 = vmul.f32 %v1200, 0.0034722222
    %v1202 = vadd.f32 %v1201, 1e-05
    %v1203 = vrsqrt.pop %v1202
    %v1204 = vmul.f32 %v1184, %v1203
    %v1205 = vmul.f32 %v1185, %v1203
    %v1206 = vmul.f32 %v1186, %v1203
    %v1207 = vmul.f32 %v1187, %v1203
    %v1208 = vld [vmem:[%s5] sm:$0xff]
    %1210 = vset.pattern.permute.xlu0 0
    %1211 = vperm.xlu0 %1210, %v1208
    %v1212 = vpop.permute.xlu0 %1211
    %v1214 = vmul.f32 %v1204, %v1212
    %v1215 = vmul.f32 %v1205, %v1212
    %v1216 = vmul.f32 %v1206, %v1212
    %v1217 = vmul.f32 %v1207, %v1212
    %v1218 = vld [vmem:[%s6] sm:$0xff]
    %1220 = vset.pattern.permute.xlu0 0
    %1221 = vperm.xlu0 %1220, %v1218
    %v1222 = vpop.permute.xlu0 %1221
    %v1224 = vadd.f32 %v1214, %v1222
    %v1225 = vadd.f32 %v1215, %v1222
    %v1226 = vadd.f32 %v1216, %v1222
    %v1227 = vadd.f32 %v1217, %v1222
    %v1228 = vmax.f32 %v1224, 0.0
    %v1229 = vmax.f32 %v1225, 0.0
    %v1230 = vmax.f32 %v1226, 0.0
    %v1231 = vmax.f32 %v1227, 0.0
    %v1232 = vmul.f32 %v1228, %v328
    %v1233 = vmul.f32 %v1229, %v332
    %v1234 = vmul.f32 %v1230, %v336
    %v1235 = vmul.f32 %v1231, %v340
    %1236 = vst [vmem:[#allocation4] sm:$0xff] 0.0
    %1237 = vst [vmem:[#allocation4 + $0x28] sm:$0xff] 0.0
    %1238 = vst [vmem:[#allocation4 + $0x8] sm:$0xff] %v1232
    %1239 = vst [vmem:[#allocation4 + $0x10] sm:$0xff] %v1233
    %1240 = vst [vmem:[#allocation4 + $0x18] sm:$0xff] %v1234
    %1241 = vst [vmem:[#allocation4 + $0x20] sm:$0xff] %v1235
    %v1242 = vld [vmem:[#allocation4] sm:$0xff]
    %v1243 = vld [vmem:[#allocation4 + $0x8] sm:$0xff]
    %v1244 = vld [vmem:[#allocation4 + $0x10] sm:$0xff]
    %v1245 = vld [vmem:[#allocation4 + $0x18] sm:$0xff]
    %v1246 = vld [vmem:[#allocation4 + $0x20] sm:$0xff]
    %1252 = vrot.lane.b32.xlu0 %v1242, 15
    %v1253 = vpop.permute.xlu0 %1252
    %1254 = vrot.lane.b32.xlu0 %v1243, 15
    %v1255 = vpop.permute.xlu0 %1254
    %1256 = vrot.lane.b32.xlu0 %v1244, 15
    %v1257 = vpop.permute.xlu0 %1256
    %1258 = vrot.lane.b32.xlu0 %v1245, 15
    %v1259 = vpop.permute.xlu0 %1258
    %1260 = vrot.lane.b32.xlu0 %v1246, 15
    %v1261 = vpop.permute.xlu0 %1260
    %v1262 = vsel %vm763, %v1253, %v1255
    %v1263 = vsel %vm763, %v1255, %v1257
    %v1264 = vsel %vm763, %v1257, %v1259
    %v1265 = vsel %vm763, %v1259, %v1261
    %1270 = vst [vmem:[#allocation5] sm:$0xff] %v1262
    %1271 = vst [vmem:[#allocation5 + $0x8] sm:$0xff] %v1263
    %1272 = vst [vmem:[#allocation5 + $0x10] sm:$0xff] %v1264
    %1273 = vst [vmem:[#allocation5 + $0x18] sm:$0xff] %v1265
    %v1274 = vld [vmem:[#allocation4] sm:$0xff]
    %v1275 = vld [vmem:[#allocation4 + $0x8] sm:$0xff]
    %v1276 = vld [vmem:[#allocation4 + $0x10] sm:$0xff]
    %v1277 = vld [vmem:[#allocation4 + $0x18] sm:$0xff]
    %v1278 = vld [vmem:[#allocation4 + $0x20] sm:$0xff]
    %1284 = vrot.lane.b32.xlu0 %v1274, 14
    %v1285 = vpop.permute.xlu0 %1284
    %1286 = vrot.lane.b32.xlu0 %v1275, 14
    %v1287 = vpop.permute.xlu0 %1286
    %1288 = vrot.lane.b32.xlu0 %v1276, 14
    %v1289 = vpop.permute.xlu0 %1288
    %1290 = vrot.lane.b32.xlu0 %v1277, 14
    %v1291 = vpop.permute.xlu0 %1290
    %1292 = vrot.lane.b32.xlu0 %v1278, 14
    %v1293 = vpop.permute.xlu0 %1292
    %v1294 = vsel %vm796, %v1285, %v1287
    %v1295 = vsel %vm796, %v1287, %v1289
    %v1296 = vsel %vm796, %v1289, %v1291
    %v1297 = vsel %vm796, %v1291, %v1293
    %1302 = vst [vmem:[#allocation5 + $0x20] sm:$0xff] %v1294
    %1303 = vst [vmem:[#allocation5 + $0x28] sm:$0xff] %v1295
    %1304 = vst [vmem:[#allocation5 + $0x30] sm:$0xff] %v1296
    %1305 = vst [vmem:[#allocation5 + $0x38] sm:$0xff] %v1297
    %v1306 = vld [vmem:[#allocation4] sm:$0xff]
    %v1307 = vld [vmem:[#allocation4 + $0x8] sm:$0xff]
    %v1308 = vld [vmem:[#allocation4 + $0x10] sm:$0xff]
    %v1309 = vld [vmem:[#allocation4 + $0x18] sm:$0xff]
    %v1310 = vld [vmem:[#allocation4 + $0x20] sm:$0xff]
    %1316 = vrot.lane.b32.xlu0 %v1306, 13
    %v1317 = vpop.permute.xlu0 %1316
    %1318 = vrot.lane.b32.xlu0 %v1307, 13
    %v1319 = vpop.permute.xlu0 %1318
    %1320 = vrot.lane.b32.xlu0 %v1308, 13
    %v1321 = vpop.permute.xlu0 %1320
    %1322 = vrot.lane.b32.xlu0 %v1309, 13
    %v1323 = vpop.permute.xlu0 %1322
    %1324 = vrot.lane.b32.xlu0 %v1310, 13
    %v1325 = vpop.permute.xlu0 %1324
    %v1326 = vsel %vm829, %v1317, %v1319
    %v1327 = vsel %vm829, %v1319, %v1321
    %v1328 = vsel %vm829, %v1321, %v1323
    %v1329 = vsel %vm829, %v1323, %v1325
    %1334 = vst [vmem:[#allocation5 + $0x40] sm:$0xff] %v1326
    %1335 = vst [vmem:[#allocation5 + $0x48] sm:$0xff] %v1327
    %1336 = vst [vmem:[#allocation5 + $0x50] sm:$0xff] %v1328
    %1337 = vst [vmem:[#allocation5 + $0x58] sm:$0xff] %v1329
    %v1338 = vld [vmem:[#allocation4] sm:$0xff]
    %v1339 = vld [vmem:[#allocation4 + $0x8] sm:$0xff]
    %v1340 = vld [vmem:[#allocation4 + $0x10] sm:$0xff]
    %v1341 = vld [vmem:[#allocation4 + $0x18] sm:$0xff]
    %v1342 = vld [vmem:[#allocation4 + $0x20] sm:$0xff]
    %1348 = vrot.lane.b32.xlu0 %v1338, 1
    %v1349 = vpop.permute.xlu0 %1348
    %1350 = vrot.lane.b32.xlu0 %v1339, 1
    %v1351 = vpop.permute.xlu0 %1350
    %1352 = vrot.lane.b32.xlu0 %v1340, 1
    %v1353 = vpop.permute.xlu0 %1352
    %1354 = vrot.lane.b32.xlu0 %v1341, 1
    %v1355 = vpop.permute.xlu0 %1354
    %1356 = vrot.lane.b32.xlu0 %v1342, 1
    %v1357 = vpop.permute.xlu0 %1356
    %v1358 = vsel %vm862, %v1349, %v1351
    %v1359 = vsel %vm862, %v1351, %v1353
    %v1360 = vsel %vm862, %v1353, %v1355
    %v1361 = vsel %vm862, %v1355, %v1357
    %1366 = vst [vmem:[#allocation5 + $0x60] sm:$0xff] %v1358
    %1367 = vst [vmem:[#allocation5 + $0x68] sm:$0xff] %v1359
    %1368 = vst [vmem:[#allocation5 + $0x70] sm:$0xff] %v1360
    %1369 = vst [vmem:[#allocation5 + $0x78] sm:$0xff] %v1361
    %v1370 = vld [vmem:[#allocation4 + $0x8] sm:$0xff]
    %v1371 = vld [vmem:[#allocation4 + $0x10] sm:$0xff]
    %v1372 = vld [vmem:[#allocation4 + $0x18] sm:$0xff]
    %v1373 = vld [vmem:[#allocation4 + $0x20] sm:$0xff]
    %1374 = vst [vmem:[#allocation5 + $0x80] sm:$0xff] %v1370
    %1375 = vst [vmem:[#allocation5 + $0x88] sm:$0xff] %v1371
    %1376 = vst [vmem:[#allocation5 + $0x90] sm:$0xff] %v1372
    %1377 = vst [vmem:[#allocation5 + $0x98] sm:$0xff] %v1373
    %v1378 = vld [vmem:[#allocation4 + $0x8] sm:$0xff]
    %v1379 = vld [vmem:[#allocation4 + $0x10] sm:$0xff]
    %v1380 = vld [vmem:[#allocation4 + $0x18] sm:$0xff]
    %v1381 = vld [vmem:[#allocation4 + $0x20] sm:$0xff]
    %v1382 = vld [vmem:[#allocation4 + $0x28] sm:$0xff]
    %1388 = vrot.lane.b32.xlu0 %v1378, 127
    %v1389 = vpop.permute.xlu0 %1388
    %1390 = vrot.lane.b32.xlu0 %v1379, 127
    %v1391 = vpop.permute.xlu0 %1390
    %1392 = vrot.lane.b32.xlu0 %v1380, 127
    %v1393 = vpop.permute.xlu0 %1392
    %1394 = vrot.lane.b32.xlu0 %v1381, 127
    %v1395 = vpop.permute.xlu0 %1394
    %1396 = vrot.lane.b32.xlu0 %v1382, 127
    %v1397 = vpop.permute.xlu0 %1396
    %v1398 = vsel %vm903, %v1389, %v1391
    %v1399 = vsel %vm903, %v1391, %v1393
    %v1400 = vsel %vm903, %v1393, %v1395
    %v1401 = vsel %vm903, %v1395, %v1397
    %1406 = vst [vmem:[#allocation5 + $0xa0] sm:$0xff] %v1398
    %1407 = vst [vmem:[#allocation5 + $0xa8] sm:$0xff] %v1399
    %1408 = vst [vmem:[#allocation5 + $0xb0] sm:$0xff] %v1400
    %1409 = vst [vmem:[#allocation5 + $0xb8] sm:$0xff] %v1401
    %v1410 = vld [vmem:[#allocation4 + $0x8] sm:$0xff]
    %v1411 = vld [vmem:[#allocation4 + $0x10] sm:$0xff]
    %v1412 = vld [vmem:[#allocation4 + $0x18] sm:$0xff]
    %v1413 = vld [vmem:[#allocation4 + $0x20] sm:$0xff]
    %v1414 = vld [vmem:[#allocation4 + $0x28] sm:$0xff]
    %1420 = vrot.lane.b32.xlu0 %v1410, 115
    %v1421 = vpop.permute.xlu0 %1420
    %1422 = vrot.lane.b32.xlu0 %v1411, 115
    %v1423 = vpop.permute.xlu0 %1422
    %1424 = vrot.lane.b32.xlu0 %v1412, 115
    %v1425 = vpop.permute.xlu0 %1424
    %1426 = vrot.lane.b32.xlu0 %v1413, 115
    %v1427 = vpop.permute.xlu0 %1426
    %1428 = vrot.lane.b32.xlu0 %v1414, 115
    %v1429 = vpop.permute.xlu0 %1428
    %v1430 = vsel %vm936, %v1421, %v1423
    %v1431 = vsel %vm936, %v1423, %v1425
    %v1432 = vsel %vm936, %v1425, %v1427
    %v1433 = vsel %vm936, %v1427, %v1429
    %1438 = vst [vmem:[#allocation5 + $0xc0] sm:$0xff] %v1430
    %1439 = vst [vmem:[#allocation5 + $0xc8] sm:$0xff] %v1431
    %1440 = vst [vmem:[#allocation5 + $0xd0] sm:$0xff] %v1432
    %1441 = vst [vmem:[#allocation5 + $0xd8] sm:$0xff] %v1433
    %v1442 = vld [vmem:[#allocation4 + $0x8] sm:$0xff]
    %v1443 = vld [vmem:[#allocation4 + $0x10] sm:$0xff]
    %v1444 = vld [vmem:[#allocation4 + $0x18] sm:$0xff]
    %v1445 = vld [vmem:[#allocation4 + $0x20] sm:$0xff]
    %v1446 = vld [vmem:[#allocation4 + $0x28] sm:$0xff]
    %1452 = vrot.lane.b32.xlu0 %v1442, 114
    %v1453 = vpop.permute.xlu0 %1452
    %1454 = vrot.lane.b32.xlu0 %v1443, 114
    %v1455 = vpop.permute.xlu0 %1454
    %1456 = vrot.lane.b32.xlu0 %v1444, 114
    %v1457 = vpop.permute.xlu0 %1456
    %1458 = vrot.lane.b32.xlu0 %v1445, 114
    %v1459 = vpop.permute.xlu0 %1458
    %1460 = vrot.lane.b32.xlu0 %v1446, 114
    %v1461 = vpop.permute.xlu0 %1460
    %v1462 = vsel %vm969, %v1453, %v1455
    %v1463 = vsel %vm969, %v1455, %v1457
    %v1464 = vsel %vm969, %v1457, %v1459
    %v1465 = vsel %vm969, %v1459, %v1461
    %1470 = vst [vmem:[#allocation5 + $0xe0] sm:$0xff] %v1462
    %1471 = vst [vmem:[#allocation5 + $0xe8] sm:$0xff] %v1463
    %1472 = vst [vmem:[#allocation5 + $0xf0] sm:$0xff] %v1464
    %1473 = vst [vmem:[#allocation5 + $0xf8] sm:$0xff] %v1465
    %v1474 = vld [vmem:[#allocation4 + $0x8] sm:$0xff]
    %v1475 = vld [vmem:[#allocation4 + $0x10] sm:$0xff]
    %v1476 = vld [vmem:[#allocation4 + $0x18] sm:$0xff]
    %v1477 = vld [vmem:[#allocation4 + $0x20] sm:$0xff]
    %v1478 = vld [vmem:[#allocation4 + $0x28] sm:$0xff]
    %1484 = vrot.lane.b32.xlu0 %v1474, 113
    %v1485 = vpop.permute.xlu0 %1484
    %1486 = vrot.lane.b32.xlu0 %v1475, 113
    %v1487 = vpop.permute.xlu0 %1486
    %1488 = vrot.lane.b32.xlu0 %v1476, 113
    %v1489 = vpop.permute.xlu0 %1488
    %1490 = vrot.lane.b32.xlu0 %v1477, 113
    %v1491 = vpop.permute.xlu0 %1490
    %1492 = vrot.lane.b32.xlu0 %v1478, 113
    %v1493 = vpop.permute.xlu0 %1492
    %v1494 = vsel %vm1002, %v1485, %v1487
    %v1495 = vsel %vm1002, %v1487, %v1489
    %v1496 = vsel %vm1002, %v1489, %v1491
    %v1497 = vsel %vm1002, %v1491, %v1493
    %1502 = vst [vmem:[#allocation5 + $0x100] sm:$0xff] %v1494
    %1503 = vst [vmem:[#allocation5 + $0x108] sm:$0xff] %v1495
    %1504 = vst [vmem:[#allocation5 + $0x110] sm:$0xff] %v1496
    %1505 = vst [vmem:[#allocation5 + $0x118] sm:$0xff] %v1497
    %v1506 = vld [vmem:[%s8] sm:$0xf]
    %v1507 = vld [vmem:[#allocation5] sm:$0xff]
    %v1508 = vld [vmem:[#allocation5 + $0x8] sm:$0xff]
    %v1509 = vld [vmem:[#allocation5 + $0x10] sm:$0xff]
    %v1510 = vld [vmem:[#allocation5 + $0x18] sm:$0xff]
    %v1511 = vld [vmem:[#allocation5 + $0x20] sm:$0xff]
    %v1512 = vld [vmem:[#allocation5 + $0x28] sm:$0xff]
    %v1513 = vld [vmem:[#allocation5 + $0x30] sm:$0xff]
    %v1514 = vld [vmem:[#allocation5 + $0x38] sm:$0xff]
    %v1515 = vld [vmem:[#allocation5 + $0x40] sm:$0xff]
    %v1516 = vld [vmem:[#allocation5 + $0x48] sm:$0xff]
    %v1517 = vld [vmem:[#allocation5 + $0x50] sm:$0xff]
    %v1518 = vld [vmem:[#allocation5 + $0x58] sm:$0xff]
    %v1519 = vld [vmem:[#allocation5 + $0x60] sm:$0xff]
    %v1520 = vld [vmem:[#allocation5 + $0x68] sm:$0xff]
    %v1521 = vld [vmem:[#allocation5 + $0x70] sm:$0xff]
    %v1522 = vld [vmem:[#allocation5 + $0x78] sm:$0xff]
    %v1523 = vld [vmem:[#allocation5 + $0x80] sm:$0xff]
    %v1524 = vld [vmem:[#allocation5 + $0x88] sm:$0xff]
    %v1525 = vld [vmem:[#allocation5 + $0x90] sm:$0xff]
    %v1526 = vld [vmem:[#allocation5 + $0x98] sm:$0xff]
    %v1527 = vld [vmem:[#allocation5 + $0xa0] sm:$0xff]
    %v1528 = vld [vmem:[#allocation5 + $0xa8] sm:$0xff]
    %v1529 = vld [vmem:[#allocation5 + $0xb0] sm:$0xff]
    %v1530 = vld [vmem:[#allocation5 + $0xb8] sm:$0xff]
    %v1531 = vld [vmem:[#allocation5 + $0xc0] sm:$0xff]
    %v1532 = vld [vmem:[#allocation5 + $0xc8] sm:$0xff]
    %v1533 = vld [vmem:[#allocation5 + $0xd0] sm:$0xff]
    %v1534 = vld [vmem:[#allocation5 + $0xd8] sm:$0xff]
    %v1535 = vld [vmem:[#allocation5 + $0xe0] sm:$0xff]
    %v1536 = vld [vmem:[#allocation5 + $0xe8] sm:$0xff]
    %v1537 = vld [vmem:[#allocation5 + $0xf0] sm:$0xff]
    %v1538 = vld [vmem:[#allocation5 + $0xf8] sm:$0xff]
    %v1539 = vld [vmem:[#allocation5 + $0x100] sm:$0xff]
    %v1540 = vld [vmem:[#allocation5 + $0x108] sm:$0xff]
    %v1541 = vld [vmem:[#allocation5 + $0x110] sm:$0xff]
    %v1542 = vld [vmem:[#allocation5 + $0x118] sm:$0xff]
    %v1543 = vpack.c.bf16 %v1511, %v1507
    %v1544 = vpack.c.bf16 %v1512, %v1508
    %v1545 = vpack.c.bf16 %v1513, %v1509
    %v1546 = vpack.c.bf16 %v1514, %v1510
    %v1547 = vpack.c.bf16 %v1519, %v1515
    %v1548 = vpack.c.bf16 %v1520, %v1516
    %v1549 = vpack.c.bf16 %v1521, %v1517
    %v1550 = vpack.c.bf16 %v1522, %v1518
    %v1551 = vpack.c.bf16 %v1527, %v1523
    %v1552 = vpack.c.bf16 %v1528, %v1524
    %v1553 = vpack.c.bf16 %v1529, %v1525
    %v1554 = vpack.c.bf16 %v1530, %v1526
    %v1555 = vpack.c.bf16 %v1535, %v1531
    %v1556 = vpack.c.bf16 %v1536, %v1532
    %v1557 = vpack.c.bf16 %v1537, %v1533
    %v1558 = vpack.c.bf16 %v1538, %v1534
    %v1559 = vpack.c.bf16 %v1539, %v1539
    %v1560 = vpack.c.bf16 %v1540, %v1540
    %v1561 = vpack.c.bf16 %v1541, %v1541
    %v1562 = vpack.c.bf16 %v1542, %v1542
    %v1564 = vsel %vm1072, %v1506, 0
    %v1567 = vsel %vm288, %v1559, 0
    %v1570 = vsel %vm288, %v1560, 0
    %v1573 = vsel %vm288, %v1561, 0
    %v1576 = vsel %vm288, %v1562, 0
    %1578 = vmatprep.subr.bf16.mxu0 %v1544
    %1579 = vmatpush1.bf16.msra.mxu0 %v1543
    %1580 = vmatprep.subr.bf16.mxu0 %v1548
    %1581 = vmatpush1.bf16.msra.mxu0 %v1547
    %1582 = vmatprep.subr.bf16.mxu0 %v1552
    %1583 = vmatpush1.bf16.msra.mxu0 %v1551
    %1584 = vmatprep.subr.bf16.mxu0 %v1556
    %1585 = vmatpush1.bf16.msra.mxu0 %v1555
    %1586 = vmatprep.subr.bf16.mxu0 %v1570
    %1587 = vmatpush1.bf16.msra.mxu0 %v1567
    %1588 = vmatprep.subr.bf16.mxu0 0
    %1589 = vmatpush1.bf16.msra.mxu0 0
    %1590 = vmatprep.subr.bf16.mxu0 0
    %1591 = vmatpush1.bf16.msra.mxu0 0
    %1592 = vmatprep.subr.bf16.mxu0 0
    %1593 = vmatpush1.bf16.msra.mxu0 0
    %1594 = vmatprep.subr.bf16.mxu0 0
    %1595 = vmatpush1.bf16.msra.mxu0 0
    %1596 = vmatprep.subr.bf16.mxu0 0
    %1597 = vmatpush1.bf16.msra.mxu0 0
    %1598 = vmatprep.subr.bf16.mxu0 0
    %1599 = vmatpush1.bf16.msra.mxu0 0
    %1600 = vmatprep.subr.bf16.mxu0 0
    %1601 = vmatpush1.bf16.msra.mxu0 0
    %1602 = vmatprep.subr.bf16.mxu0 0
    %1603 = vmatpush1.bf16.msra.mxu0 0
    %1604 = vmatprep.subr.bf16.mxu0 0
    %1605 = vmatpush1.bf16.msra.mxu0 0
    %1606 = vmatprep.subr.bf16.mxu0 0
    %1607 = vmatpush1.bf16.msra.mxu0 0
    %1608 = vmatprep.subr.bf16.mxu0 0
    %1609 = vmatpush1.bf16.msra.mxu0 0
    %1610 = vmatprep.mubr.bf16.mxu0 0
    %1611 = vmatmul.mubr.bf16.gmra.mrb[0].mxu0 %v1564
    %v1612 = vpop.f32.mrb[0].mxu0
    %v1613 = vadd.f32 %v646, %v1612
    %v1614 = vpop.f32.mrb[0].mxu0
    %v1615 = vadd.f32 %v648, %v1614
    %v1616 = vpop.f32.mrb[0].mxu0
    %v1617 = vpop.f32.mrb[0].mxu0
    %1618 = vdwg.mxu0
    %1619 = vmatprep.subr.bf16.mxu0 %v1546
    %1620 = vmatpush1.bf16.msra.mxu0 %v1545
    %1621 = vmatprep.subr.bf16.mxu0 %v1550
    %1622 = vmatpush1.bf16.msra.mxu0 %v1549
    %1623 = vmatprep.subr.bf16.mxu0 %v1554
    %1624 = vmatpush1.bf16.msra.mxu0 %v1553
    %1625 = vmatprep.subr.bf16.mxu0 %v1558
    %1626 = vmatpush1.bf16.msra.mxu0 %v1557
    %1627 = vmatprep.subr.bf16.mxu0 %v1576
    %1628 = vmatpush1.bf16.msra.mxu0 %v1573
    %1629 = vmatprep.subr.bf16.mxu0 0
    %1630 = vmatpush1.bf16.msra.mxu0 0
    %1631 = vmatprep.subr.bf16.mxu0 0
    %1632 = vmatpush1.bf16.msra.mxu0 0
    %1633 = vmatprep.subr.bf16.mxu0 0
    %1634 = vmatpush1.bf16.msra.mxu0 0
    %1635 = vmatprep.subr.bf16.mxu0 0
    %1636 = vmatpush1.bf16.msra.mxu0 0
    %1637 = vmatprep.subr.bf16.mxu0 0
    %1638 = vmatpush1.bf16.msra.mxu0 0
    %1639 = vmatprep.subr.bf16.mxu0 0
    %1640 = vmatpush1.bf16.msra.mxu0 0
    %1641 = vmatprep.subr.bf16.mxu0 0
    %1642 = vmatpush1.bf16.msra.mxu0 0
    %1643 = vmatprep.subr.bf16.mxu0 0
    %1644 = vmatpush1.bf16.msra.mxu0 0
    %1645 = vmatprep.subr.bf16.mxu0 0
    %1646 = vmatpush1.bf16.msra.mxu0 0
    %1647 = vmatprep.subr.bf16.mxu0 0
    %1648 = vmatpush1.bf16.msra.mxu0 0
    %1649 = vmatprep.subr.bf16.mxu0 0
    %1650 = vmatpush1.bf16.msra.mxu0 0
    %1651 = vmatprep.mubr.bf16.mxu0 0
    %1652 = vmatmul.mubr.bf16.gmra.mrb[0].mxu0 %v1564
    %v1653 = vpop.f32.mrb[0].mxu0
    %v1654 = vadd.f32 %v717, %v1653
    %v1655 = vpop.f32.mrb[0].mxu0
    %v1656 = vadd.f32 %v719, %v1655
    %v1657 = vpop.f32.mrb[0].mxu0
    %v1658 = vpop.f32.mrb[0].mxu0
    %1659 = vdwg.mxu0
    %1660 = vst [vmem:[#allocation6] sm:$0xff] %v1613
    %1661 = vst [vmem:[#allocation6 + $0x8] sm:$0xff] %v1615
    %1662 = vst [vmem:[#allocation6 + $0x10] sm:$0xff] %v1654
    %1663 = vst [vmem:[#allocation6 + $0x18] sm:$0xff] %v1656
    // Predicated region
    $region46: #{tpu_custom_call.1} parent=1 // pred_check
      _
    $region47: #{tpu_custom_call.1} parent=1 // pred_check_branch
      %1665 = sbr.rel (0) target = $region49
    $region48: #{tpu_custom_call.1} parent=1 // pred_region
      %s1667 = ssub.s32 512, 512
      %1668 = vsyncadd [#allocation7], %s1667
      %s1670 = sshll.u32 [#allocation6], 4
      %s1671 = int_to_ptr.vmem [resolvable:$true] %s1670
      %1673 = dma.vmem_to_hbm [thread:$0]  %s1671, 512, %s11, [#allocation7]
    $region49: #{tpu_custom_call.1} parent=1 // pred_fallthru
      _
    // Predicated region
    $region50: #{tpu_custom_call.1} parent=1 // pred_check
      _
    $region51: #{tpu_custom_call.1} parent=1 // pred_check_branch
      %1675 = sbr.rel (0) target = $region53
    $region52: #{tpu_custom_call.1} parent=1 // pred_region
      %1676 = dma.done [#allocation7], 512
    $region53: #{tpu_custom_call.1} parent=1 // pred_fallthru
      _
    %1677 = vsyncpa [#allocation7], 1

</llo_original>
